<compile_context>
chip_gen: v7x
topology: tpu7x:2x2x1
jax: 0.10.0
libtpu: 0.0.40
codegen_flags: <defaults>
</compile_context>

<pallas_src>
import jax
import jax.numpy as jnp
from jax.experimental import pallas as pl
from jax.experimental.pallas import tpu as pltpu

# ---- model hyper-parameters (small, consistent with the module) -------------
N_NODES = 16       # number of graph nodes
IN_CH = 32         # dataset.num_features (Cora=1433; small synthetic stand-in)
HIDDEN = 16        # hidden_channels
OUT_CH = 2         # out_channels
HEADS = 2          # num_heads of conv1
NEG_SLOPE = 0.2    # GATConv LeakyReLU negative slope (PyG default)
LANE = 128         # lane width / padded output width
BATCH = 4          # independent graphs per kernel launch (grid axis)


def _round8(n):
    return (n + 7) // 8 * 8


# ---- packed-parameter layout (row offsets into a [N_ROWS, LANE] buffer) ------
# Every parameter starts at column 0 and at an 8-aligned row, so in-kernel Ref
# slices need no lane or sublane shifts.
ROW_W1 = 0                                    # [IN_CH, HEADS*HIDDEN]
ROW_A1 = ROW_W1 + _round8(IN_CH)              # [HEADS*HIDDEN, 2*HEADS]  (block score matrix)
ROW_B1 = ROW_A1 + _round8(HEADS * HIDDEN)     # [1, HEADS*HIDDEN]
ROW_W2 = ROW_B1 + 8                           # [HEADS*HIDDEN, OUT_CH]
ROW_A2 = ROW_W2 + _round8(HEADS * HIDDEN)     # [OUT_CH, 2]
ROW_B2 = ROW_A2 + 8                           # [1, OUT_CH]
ROW_WL1 = ROW_B2 + 8                          # [OUT_CH, HIDDEN]
ROW_BL1 = ROW_WL1 + _round8(OUT_CH)           # [1, HIDDEN]
ROW_WL2 = ROW_BL1 + 8                         # [HIDDEN, LANE]   (lin2 padded to 128 lanes)
ROW_BL2 = ROW_WL2 + _round8(HIDDEN)           # [1, LANE]
ROW_MV = ROW_BL2 + 8                          # [1, N_NODES]     (1/N mean-pool row vector)
N_ROWS = ROW_MV + 8                           # = 168


def _elu(x):
    # exp only on the clamped-negative part: avoids transient inf on large
    # positive activations (review correctness note).
    return jnp.where(x > 0, x, jnp.exp(jnp.minimum(x, 0.0)) - 1.0)


def _gat_layer(x, adj_mask, w, score_mat, bias, heads, c_out, concat):
    """Dense GATConv.

    x: [N, Fin], adj_mask: bool [N, N] (adj_mask[i, j] = edge j -> i, WITH
    self-loops), w: [Fin, heads*c_out], score_mat: [heads*c_out, 2*heads]
    block matrix (cols 0:heads -> src scores, heads:2*heads -> dst scores),
    bias: [1, heads*c_out] (concat) or [1, c_out].
    """
    n = x.shape[0]
    xp = jnp.dot(x, w, preferred_element_type=jnp.float32)               # [N, H*C]
    # All heads' attention scores in ONE MXU matmul (no per-head VPU/XLU work).
    scores = jnp.dot(xp, score_mat, preferred_element_type=jnp.float32)  # [N, 2H]
    # ONE XLU transpose for all heads (source scores as rows), hoisted out of
    # the per-head loop.
    src_t = scores[:, :heads].T                                          # [H, N]
    # Ones column appended ONCE per layer: p @ [xp | 1] gives the aggregation
    # AND the softmax denominator (row sums of p) from a single MXU matmul.
    ones_col = jnp.ones((n, 1), jnp.float32)
    xp_aug = jnp.concatenate([xp, ones_col], axis=-1)                    # [N, H*C+1]

    head_outs = []
    for h in range(heads):
        # e[i, j] = LeakyReLU(a_dst[i] + a_src[j])  (edge j -> i)
        e = scores[:, heads + h:heads + h + 1] + src_t[h:h + 1, :]       # [N, N]
        e = jnp.where(e > 0, e, NEG_SLOPE * e)
        e = jnp.where(adj_mask, e, -1e30)
        e = e - jnp.max(e, axis=-1, keepdims=True)
        # Self-loops guarantee the row max is finite, so masked entries sit at
        # ~ -1e30 after the shift and exp underflows to exactly 0: no post-exp
        # masking multiply is needed.
        p = jnp.exp(e)                                                   # [N, N]
        # Aggregation (columns h*C:(h+1)*C) and denominator (last column) in
        # one MXU op -- extra output columns are free, the MXU is idle here.
        agg = jnp.dot(p, xp_aug, preferred_element_type=jnp.float32)     # [N, H*C+1]
        unnorm = agg[:, h * c_out:(h + 1) * c_out]                       # [N, C]
        denom = agg[:, heads * c_out:heads * c_out + 1]                  # [N, 1], >= 1
        # Exact reciprocal (denom >= 1) so normalization matches the reference.
        head_outs.append(unnorm * pl.reciprocal(denom, approx=False))
    if concat:
        out = jnp.concatenate(head_outs, axis=-1)                        # [N, H*C]
    else:
        out = sum(head_outs) / float(heads)                              # [N, C]
    return out + bias


def _gnn_kernel(x_ref, adj_ref, p_ref, out_ref):
    # Batch (graph) dim of x/adj/out is squeezed by the BlockSpecs.
    x = x_ref[...]                                                       # [N, IN_CH]
    # int8 adjacency: widen once, compare once, reuse the mask for both layers.
    adj_mask = adj_ref[...].astype(jnp.float32) > 0                      # [N, N] bool

    # On-demand Ref slices of the packed parameter buffer (8-aligned rows,
    # column 0) -- the full 84 KiB buffer is never materialized in vregs.
    w1 = p_ref[ROW_W1:ROW_W1 + IN_CH, 0:HEADS * HIDDEN]
    a1 = p_ref[ROW_A1:ROW_A1 + HEADS * HIDDEN, 0:2 * HEADS]
    b1 = p_ref[ROW_B1:ROW_B1 + 1, 0:HEADS * HIDDEN]
    w2 = p_ref[ROW_W2:ROW_W2 + HEADS * HIDDEN, 0:OUT_CH]
    a2 = p_ref[ROW_A2:ROW_A2 + OUT_CH, 0:2]
    b2 = p_ref[ROW_B2:ROW_B2 + 1, 0:OUT_CH]
    wl1 = p_ref[ROW_WL1:ROW_WL1 + OUT_CH, 0:HIDDEN]
    bl1 = p_ref[ROW_BL1:ROW_BL1 + 1, 0:HIDDEN]
    wl2 = p_ref[ROW_WL2:ROW_WL2 + HIDDEN, 0:LANE]    # padded to 128 output lanes
    bl2 = p_ref[ROW_BL2:ROW_BL2 + 1, 0:LANE]
    meanvec = p_ref[ROW_MV:ROW_MV + 1, 0:N_NODES]    # [1, N] of 1/N

    # conv1: GATConv(IN_CH, HIDDEN, heads=2, concat=True) + ELU
    h1 = _elu(_gat_layer(x, adj_mask, w1, a1, b1, HEADS, HIDDEN, True))   # [N, 32]
    # conv2: GATConv(32, OUT_CH, heads=1, concat=False)
    h2 = _gat_layer(h1, adj_mask, w2, a2, b2, 1, OUT_CH, False)           # [N, 2]

    # F.dropout(p=0.5, training=False): identity in eval mode.
    h3 = _elu(jnp.dot(h2, wl1, preferred_element_type=jnp.float32) + bl1)  # [N, 16]
    # second dropout: identity. lin2 output is lane-padded to 128 (zero columns
    # beyond OUT_CH) so the final matmul + store are fully lane-dense.
    h4 = jnp.dot(h3, wl2, preferred_element_type=jnp.float32) + bl2        # [N, 128]

    # batch = zeros(N); to_dense_batch -> [1, N, C]; global_mean_pool -> mean
    # over the node axis, done as an MXU matmul against the 1/N row vector
    # (no cross-sublane XLU reduction). Broadcast into a dense (8,128) tile.
    pooled = jnp.dot(meanvec, h4, preferred_element_type=jnp.float32)      # [1, 128]
    out_ref[...] = jnp.broadcast_to(pooled, out_ref.shape)                 # (8, 128)


def gnn_forward(x, adj, packed_params):
    """x: [B, N, IN_CH] f32, adj: [B, N, N] int8 (with self-loops),
    packed_params: [N_ROWS, LANE] f32.  Returns [B, 1, OUT_CH]."""
    B = x.shape[0]
    padded = pl.pallas_call(
        _gnn_kernel,
        out_shape=jax.ShapeDtypeStruct((B, 8, LANE), jnp.float32),
        grid=(B,),
        in_specs=[
            pl.BlockSpec((None, N_NODES, IN_CH), lambda b: (b, 0, 0)),
            pl.BlockSpec((None, N_NODES, N_NODES), lambda b: (b, 0, 0)),
            pl.BlockSpec((N_ROWS, LANE), lambda b: (0, 0)),   # shared, stays resident
        ],
        out_specs=pl.BlockSpec((None, 8, LANE), lambda b: (b, 0, 0)),
        compiler_params=pltpu.CompilerParams(
            dimension_semantics=("parallel",)),   # 2-TC sharding on v7x
    )(x, adj, packed_params)
    # Per graph: to_dense_batch gives [1, N, 2]; global_mean_pool yields the
    # node mean -> [1, OUT_CH] per graph. Slice the valid lanes out of each
    # padded (8, 128) tile.
    return padded[:, 0:1, 0:OUT_CH]               # [B, 1, OUT_CH]


def build_adjacency(edge_index, n):
    """Dense int8 adjacency with adj[dst, src] = 1 plus self-loops.

    Self-loops are REQUIRED by the kernel (GATConv add_self_loops=True
    default): they guarantee every softmax row has a finite max and a
    denominator >= 1.
    """
    src, dst = edge_index[0], edge_index[1]
    adj = jnp.zeros((n, n), jnp.int8).at[dst, src].set(1)
    return jnp.maximum(adj, jnp.eye(n, dtype=jnp.int8))


def init_params(key):
    ks = jax.random.split(key, 12)
    s = 0.1
    return {
        # GATConv1: lin weight [IN_CH, HEADS*HIDDEN], att [HEADS, HIDDEN]
        "w1": s * jax.random.normal(ks[0], (IN_CH, HEADS * HIDDEN), jnp.float32),
        "att_src1": s * jax.random.normal(ks[1], (HEADS, HIDDEN), jnp.float32),
        "att_dst1": s * jax.random.normal(ks[2], (HEADS, HIDDEN), jnp.float32),
        "b1": s * jax.random.normal(ks[3], (1, HEADS * HIDDEN), jnp.float32),
        # GATConv2: lin weight [HEADS*HIDDEN, OUT_CH], att [1, OUT_CH]
        "w2": s * jax.random.normal(ks[4], (HEADS * HIDDEN, OUT_CH), jnp.float32),
        "att_src2": s * jax.random.normal(ks[5], (1, OUT_CH), jnp.float32),
        "att_dst2": s * jax.random.normal(ks[6], (1, OUT_CH), jnp.float32),
        "b2": s * jax.random.normal(ks[7], (1, OUT_CH), jnp.float32),
        # lin1: OUT_CH -> HIDDEN ; lin2: HIDDEN -> OUT_CH
        "wl1": s * jax.random.normal(ks[8], (OUT_CH, HIDDEN), jnp.float32),
        "bl1": s * jax.random.normal(ks[9], (1, HIDDEN), jnp.float32),
        "wl2": s * jax.random.normal(ks[10], (HIDDEN, OUT_CH), jnp.float32),
        "bl2": s * jax.random.normal(ks[11], (1, OUT_CH), jnp.float32),
    }


def pack_params(p):
    """Pack all parameters into a single [N_ROWS, LANE] f32 buffer (one DMA)."""
    # Block score matrix for conv1: (xp @ A1)[:, h]       = sum_c xh_h * att_src1[h]
    #                               (xp @ A1)[:, HEADS+h] = sum_c xh_h * att_dst1[h]
    A1 = jnp.zeros((HEADS * HIDDEN, 2 * HEADS), jnp.float32)
    for h in range(HEADS):
        A1 = A1.at[h * HIDDEN:(h + 1) * HIDDEN, h].set(p["att_src1"][h])
        A1 = A1.at[h * HIDDEN:(h + 1) * HIDDEN, HEADS + h].set(p["att_dst1"][h])
    # conv2 (single head)
    A2 = jnp.zeros((OUT_CH, 2), jnp.float32)
    A2 = A2.at[:, 0].set(p["att_src2"][0])
    A2 = A2.at[:, 1].set(p["att_dst2"][0])
    # lin2 padded to 128 output lanes (zero cols beyond OUT_CH) -> lane-dense
    # final matmul + store inside the kernel.
    wl2p = jnp.zeros((HIDDEN, LANE), jnp.float32).at[:, :OUT_CH].set(p["wl2"])
    bl2p = jnp.zeros((1, LANE), jnp.float32).at[:, :OUT_CH].set(p["bl2"])
    # mean-pool row vector (global_mean_pool as an MXU matmul)
    mv = jnp.full((1, N_NODES), 1.0 / N_NODES, jnp.float32)

    buf = jnp.zeros((N_ROWS, LANE), jnp.float32)

    def put(b, row, arr):
        r, c = arr.shape
        return b.at[row:row + r, 0:c].set(arr)

    buf = put(buf, ROW_W1, p["w1"])
    buf = put(buf, ROW_A1, A1)
    buf = put(buf, ROW_B1, p["b1"])
    buf = put(buf, ROW_W2, p["w2"])
    buf = put(buf, ROW_A2, A2)
    buf = put(buf, ROW_B2, p["b2"])
    buf = put(buf, ROW_WL1, p["wl1"])
    buf = put(buf, ROW_BL1, p["bl1"])
    buf = put(buf, ROW_WL2, wl2p)
    buf = put(buf, ROW_BL2, bl2p)
    buf = put(buf, ROW_MV, mv)
    return buf


if __name__ == "__main__":
    key = jax.random.PRNGKey(0)
    k_x, k_e, k_p = jax.random.split(key, 3)

    # A batch of BATCH independent small graphs (each processed exactly like
    # the single-graph PyTorch module; batching just pipelines the DMAs).
    x = jax.random.normal(k_x, (BATCH, N_NODES, IN_CH), jnp.float32)

    n_edges = 32
    adjs = []
    for g in range(BATCH):
        kg1, kg2 = jax.random.split(jax.random.fold_in(k_e, g))
        src = jax.random.randint(kg1, (n_edges,), 0, N_NODES, jnp.int32)
        dst = jax.random.randint(kg2, (n_edges,), 0, N_NODES, jnp.int32)
        adjs.append(build_adjacency(jnp.stack([src, dst], axis=0), N_NODES))
    adj = jnp.stack(adjs, axis=0)                    # [B, N, N] int8, with self-loops

    params = init_params(k_p)
    packed = pack_params(params)                     # [168, 128] single buffer

    out = jax.jit(gnn_forward)(x, adj, packed)
    out = jax.block_until_ready(out)
    assert out.shape == (BATCH, 1, OUT_CH)
    assert bool(jnp.all(jnp.isfinite(out)))
    print("KERNEL_OK")
</pallas_src>

<mosaic_0001>
module attributes {stable_mosaic.version = 11 : i64} {
  func.func @_gnn_kernel(%arg0: i32, %arg1: memref<1x16x32xf32, #tpu.memory_space<vmem>>, %arg2: memref<1x16x16xi8, #tpu.memory_space<vmem>>, %arg3: memref<168x128xf32, #tpu.memory_space<vmem>>, %arg4: memref<1x8x128xf32, #tpu.memory_space<vmem>>) attributes {dimension_semantics = [#tpu.dimension_semantics<parallel>], iteration_bounds = array<i64: 4>, scalar_prefetch = 0 : i64, scratch_operands = 0 : i64, tpu.core_type = #tpu.core_type<tc>, window_params = [{transform_indices = @transform_0, window_bounds = array<i64: 1, 16, 32>}, {transform_indices = @transform_1, window_bounds = array<i64: 1, 16, 16>}, {pipeline_mode = #tpu.pipeline_mode<synchronous>, transform_indices = @transform_2, window_bounds = array<i64: 168, 128>}, {transform_indices = @transform_3, window_bounds = array<i64: 1, 8, 128>}]} {
    %c0 = arith.constant 0 : index
    %c0_0 = arith.constant 0 : index
    %c0_1 = arith.constant 0 : index
    %0 = vector.load %arg1[%c0, %c0_0, %c0_1] : memref<1x16x32xf32, #tpu.memory_space<vmem>>, vector<1x16x32xf32>
    %1 = vector.shape_cast %0 : vector<1x16x32xf32> to vector<16x32xf32>
    %c0_2 = arith.constant 0 : index
    %c0_3 = arith.constant 0 : index
    %c0_4 = arith.constant 0 : index
    %2 = vector.load %arg2[%c0_2, %c0_3, %c0_4] : memref<1x16x16xi8, #tpu.memory_space<vmem>>, vector<1x16x16xi8>
    %3 = vector.shape_cast %2 : vector<1x16x16xi8> to vector<16x16xi8>
    %4 = arith.sitofp %3 : vector<16x16xi8> to vector<16x16xf32>
    %cst = arith.constant 0.000000e+00 : f32
    %5 = vector.broadcast %cst : f32 to vector<16x16xf32>
    %6 = arith.cmpf ogt, %4, %5 : vector<16x16xf32>
    %c0_5 = arith.constant 0 : index
    %c0_6 = arith.constant 0 : index
    %7 = vector.load %arg3[%c0_5, %c0_6] : memref<168x128xf32, #tpu.memory_space<vmem>>, vector<32x32xf32>
    %c32 = arith.constant 32 : index
    %c0_7 = arith.constant 0 : index
    %8 = vector.load %arg3[%c32, %c0_7] : memref<168x128xf32, #tpu.memory_space<vmem>>, vector<32x4xf32>
    %c64 = arith.constant 64 : index
    %c0_8 = arith.constant 0 : index
    %9 = vector.load %arg3[%c64, %c0_8] : memref<168x128xf32, #tpu.memory_space<vmem>>, vector<1x32xf32>
    %c72 = arith.constant 72 : index
    %c0_9 = arith.constant 0 : index
    %10 = vector.load %arg3[%c72, %c0_9] : memref<168x128xf32, #tpu.memory_space<vmem>>, vector<32x2xf32>
    %c104 = arith.constant 104 : index
    %c0_10 = arith.constant 0 : index
    %11 = vector.load %arg3[%c104, %c0_10] : memref<168x128xf32, #tpu.memory_space<vmem>>, vector<2x2xf32>
    %c112 = arith.constant 112 : index
    %c0_11 = arith.constant 0 : index
    %12 = vector.load %arg3[%c112, %c0_11] : memref<168x128xf32, #tpu.memory_space<vmem>>, vector<1x2xf32>
    %c120 = arith.constant 120 : index
    %c0_12 = arith.constant 0 : index
    %13 = vector.load %arg3[%c120, %c0_12] : memref<168x128xf32, #tpu.memory_space<vmem>>, vector<2x16xf32>
    %c128 = arith.constant 128 : index
    %c0_13 = arith.constant 0 : index
    %14 = vector.load %arg3[%c128, %c0_13] : memref<168x128xf32, #tpu.memory_space<vmem>>, vector<1x16xf32>
    %c136 = arith.constant 136 : index
    %c0_14 = arith.constant 0 : index
    %15 = vector.load %arg3[%c136, %c0_14] : memref<168x128xf32, #tpu.memory_space<vmem>>, vector<16x128xf32>
    %c152 = arith.constant 152 : index
    %c0_15 = arith.constant 0 : index
    %16 = vector.load %arg3[%c152, %c0_15] : memref<168x128xf32, #tpu.memory_space<vmem>>, vector<1x128xf32>
    %c160 = arith.constant 160 : index
    %c0_16 = arith.constant 0 : index
    %17 = vector.load %arg3[%c160, %c0_16] : memref<168x128xf32, #tpu.memory_space<vmem>>, vector<1x16xf32>
    %cst_17 = arith.constant dense<0.000000e+00> : vector<16x32xf32>
    %18 = tpu.matmul %1, %7, %cst_17 {dimension_numbers = #tpu.dot_dimension_numbers<[1], [0], [0], [1], [0, 0, 1, 1], [], []>} : vector<16x32xf32>, vector<32x32xf32>, vector<16x32xf32> -> vector<16x32xf32>
    %cst_18 = arith.constant dense<0.000000e+00> : vector<16x4xf32>
    %19 = tpu.matmul %18, %8, %cst_18 {dimension_numbers = #tpu.dot_dimension_numbers<[1], [0], [0], [1], [0, 0, 1, 1], [], []>} : vector<16x32xf32>, vector<32x4xf32>, vector<16x4xf32> -> vector<16x4xf32>
    %20 = vector.extract_strided_slice %19 {offsets = [0, 0], sizes = [16, 2], strides = [1, 1]} : vector<16x4xf32> to vector<16x2xf32>
    %21 = tpu.transpose %20, [1, 0] : vector<16x2xf32> -> vector<2x16xf32>
    %cst_19 = arith.constant 1.000000e+00 : f32
    %22 = vector.broadcast %cst_19 : f32 to vector<16x1xf32>
    %23 = tpu.concatenate %18, %22 in 1 : vector<16x32xf32>, vector<16x1xf32> -> vector<16x33xf32>
    %24 = vector.extract_strided_slice %19 {offsets = [0, 2], sizes = [16, 1], strides = [1, 1]} : vector<16x4xf32> to vector<16x1xf32>
    %25 = vector.extract_strided_slice %21 {offsets = [0, 0], sizes = [1, 16], strides = [1, 1]} : vector<2x16xf32> to vector<1x16xf32>
    %26 = vector.broadcast %24 : vector<16x1xf32> to vector<16x16xf32>
    %27 = vector.broadcast %25 : vector<1x16xf32> to vector<16x16xf32>
    %28 = arith.addf %26, %27 : vector<16x16xf32>
    %cst_20 = arith.constant 0.000000e+00 : f32
    %29 = vector.broadcast %cst_20 : f32 to vector<16x16xf32>
    %30 = arith.cmpf ogt, %28, %29 : vector<16x16xf32>
    %cst_21 = arith.constant 2.000000e-01 : f32
    %31 = vector.broadcast %cst_21 : f32 to vector<16x16xf32>
    %32 = arith.mulf %31, %28 : vector<16x16xf32>
    %33 = arith.select %30, %28, %32 : vector<16x16xi1>, vector<16x16xf32>
    %cst_22 = arith.constant -1.000000e+30 : f32
    %34 = vector.broadcast %cst_22 : f32 to vector<16x16xf32>
    %35 = arith.select %6, %33, %34 : vector<16x16xi1>, vector<16x16xf32>
    %cst_23 = arith.constant dense<0xFF800000> : vector<16xf32>
    %36 = vector.multi_reduction <maximumf>, %35, %cst_23 [1] : vector<16x16xf32> to vector<16xf32>
    %37 = vector.shape_cast %36 : vector<16xf32> to vector<16x1xf32>
    %38 = vector.broadcast %37 : vector<16x1xf32> to vector<16x16xf32>
    %39 = arith.subf %35, %38 : vector<16x16xf32>
    %40 = math.exp %39 : vector<16x16xf32>
    %cst_24 = arith.constant dense<0.000000e+00> : vector<16x33xf32>
    %41 = tpu.matmul %40, %23, %cst_24 {dimension_numbers = #tpu.dot_dimension_numbers<[1], [0], [0], [1], [0, 0, 1, 1], [], []>} : vector<16x16xf32>, vector<16x33xf32>, vector<16x33xf32> -> vector<16x33xf32>
    %42 = vector.extract_strided_slice %41 {offsets = [0, 0], sizes = [16, 16], strides = [1, 1]} : vector<16x33xf32> to vector<16x16xf32>
    %43 = vector.extract_strided_slice %41 {offsets = [0, 32], sizes = [16, 1], strides = [1, 1]} : vector<16x33xf32> to vector<16x1xf32>
    %44 = tpu.reciprocal %43 : vector<16x1xf32> -> vector<16x1xf32>
    %45 = vector.broadcast %44 : vector<16x1xf32> to vector<16x16xf32>
    %46 = arith.mulf %42, %45 : vector<16x16xf32>
    %47 = vector.extract_strided_slice %19 {offsets = [0, 3], sizes = [16, 1], strides = [1, 1]} : vector<16x4xf32> to vector<16x1xf32>
    %48 = vector.extract_strided_slice %21 {offsets = [1, 0], sizes = [1, 16], strides = [1, 1]} : vector<2x16xf32> to vector<1x16xf32>
    %49 = vector.broadcast %47 : vector<16x1xf32> to vector<16x16xf32>
    %50 = vector.broadcast %48 : vector<1x16xf32> to vector<16x16xf32>
    %51 = arith.addf %49, %50 : vector<16x16xf32>
    %cst_25 = arith.constant 0.000000e+00 : f32
    %52 = vector.broadcast %cst_25 : f32 to vector<16x16xf32>
    %53 = arith.cmpf ogt, %51, %52 : vector<16x16xf32>
    %cst_26 = arith.constant 2.000000e-01 : f32
    %54 = vector.broadcast %cst_26 : f32 to vector<16x16xf32>
    %55 = arith.mulf %54, %51 : vector<16x16xf32>
    %56 = arith.select %53, %51, %55 : vector<16x16xi1>, vector<16x16xf32>
    %cst_27 = arith.constant -1.000000e+30 : f32
    %57 = vector.broadcast %cst_27 : f32 to vector<16x16xf32>
    %58 = arith.select %6, %56, %57 : vector<16x16xi1>, vector<16x16xf32>
    %cst_28 = arith.constant dense<0xFF800000> : vector<16xf32>
    %59 = vector.multi_reduction <maximumf>, %58, %cst_28 [1] : vector<16x16xf32> to vector<16xf32>
    %60 = vector.shape_cast %59 : vector<16xf32> to vector<16x1xf32>
    %61 = vector.broadcast %60 : vector<16x1xf32> to vector<16x16xf32>
    %62 = arith.subf %58, %61 : vector<16x16xf32>
    %63 = math.exp %62 : vector<16x16xf32>
    %cst_29 = arith.constant dense<0.000000e+00> : vector<16x33xf32>
    %64 = tpu.matmul %63, %23, %cst_29 {dimension_numbers = #tpu.dot_dimension_numbers<[1], [0], [0], [1], [0, 0, 1, 1], [], []>} : vector<16x16xf32>, vector<16x33xf32>, vector<16x33xf32> -> vector<16x33xf32>
    %65 = vector.extract_strided_slice %64 {offsets = [0, 16], sizes = [16, 16], strides = [1, 1]} : vector<16x33xf32> to vector<16x16xf32>
    %66 = vector.extract_strided_slice %64 {offsets = [0, 32], sizes = [16, 1], strides = [1, 1]} : vector<16x33xf32> to vector<16x1xf32>
    %67 = tpu.reciprocal %66 : vector<16x1xf32> -> vector<16x1xf32>
    %68 = vector.broadcast %67 : vector<16x1xf32> to vector<16x16xf32>
    %69 = arith.mulf %65, %68 : vector<16x16xf32>
    %70 = tpu.concatenate %46, %69 in 1 : vector<16x16xf32>, vector<16x16xf32> -> vector<16x32xf32>
    %71 = vector.broadcast %9 : vector<1x32xf32> to vector<16x32xf32>
    %72 = arith.addf %70, %71 : vector<16x32xf32>
    %cst_30 = arith.constant 0.000000e+00 : f32
    %73 = vector.broadcast %cst_30 : f32 to vector<16x32xf32>
    %74 = arith.cmpf ogt, %72, %73 : vector<16x32xf32>
    %cst_31 = arith.constant 0.000000e+00 : f32
    %75 = vector.broadcast %cst_31 : f32 to vector<16x32xf32>
    %76 = arith.minimumf %72, %75 : vector<16x32xf32>
    %77 = math.exp %76 : vector<16x32xf32>
    %cst_32 = arith.constant 1.000000e+00 : f32
    %78 = vector.broadcast %cst_32 : f32 to vector<16x32xf32>
    %79 = arith.subf %77, %78 : vector<16x32xf32>
    %80 = arith.select %74, %72, %79 : vector<16x32xi1>, vector<16x32xf32>
    %cst_33 = arith.constant dense<0.000000e+00> : vector<16x2xf32>
    %81 = tpu.matmul %80, %10, %cst_33 {dimension_numbers = #tpu.dot_dimension_numbers<[1], [0], [0], [1], [0, 0, 1, 1], [], []>} : vector<16x32xf32>, vector<32x2xf32>, vector<16x2xf32> -> vector<16x2xf32>
    %cst_34 = arith.constant dense<0.000000e+00> : vector<16x2xf32>
    %82 = tpu.matmul %81, %11, %cst_34 {dimension_numbers = #tpu.dot_dimension_numbers<[1], [0], [0], [1], [0, 0, 1, 1], [], []>} : vector<16x2xf32>, vector<2x2xf32>, vector<16x2xf32> -> vector<16x2xf32>
    %83 = vector.extract_strided_slice %82 {offsets = [0, 0], sizes = [16, 1], strides = [1, 1]} : vector<16x2xf32> to vector<16x1xf32>
    %84 = tpu.transpose %83, [1, 0] : vector<16x1xf32> -> vector<1x16xf32>
    %cst_35 = arith.constant 1.000000e+00 : f32
    %85 = vector.broadcast %cst_35 : f32 to vector<16x1xf32>
    %86 = tpu.concatenate %81, %85 in 1 : vector<16x2xf32>, vector<16x1xf32> -> vector<16x3xf32>
    %87 = vector.extract_strided_slice %82 {offsets = [0, 1], sizes = [16, 1], strides = [1, 1]} : vector<16x2xf32> to vector<16x1xf32>
    %88 = vector.broadcast %87 : vector<16x1xf32> to vector<16x16xf32>
    %89 = vector.broadcast %84 : vector<1x16xf32> to vector<16x16xf32>
    %90 = arith.addf %88, %89 : vector<16x16xf32>
    %cst_36 = arith.constant 0.000000e+00 : f32
    %91 = vector.broadcast %cst_36 : f32 to vector<16x16xf32>
    %92 = arith.cmpf ogt, %90, %91 : vector<16x16xf32>
    %cst_37 = arith.constant 2.000000e-01 : f32
    %93 = vector.broadcast %cst_37 : f32 to vector<16x16xf32>
    %94 = arith.mulf %93, %90 : vector<16x16xf32>
    %95 = arith.select %92, %90, %94 : vector<16x16xi1>, vector<16x16xf32>
    %cst_38 = arith.constant -1.000000e+30 : f32
    %96 = vector.broadcast %cst_38 : f32 to vector<16x16xf32>
    %97 = arith.select %6, %95, %96 : vector<16x16xi1>, vector<16x16xf32>
    %cst_39 = arith.constant dense<0xFF800000> : vector<16xf32>
    %98 = vector.multi_reduction <maximumf>, %97, %cst_39 [1] : vector<16x16xf32> to vector<16xf32>
    %99 = vector.shape_cast %98 : vector<16xf32> to vector<16x1xf32>
    %100 = vector.broadcast %99 : vector<16x1xf32> to vector<16x16xf32>
    %101 = arith.subf %97, %100 : vector<16x16xf32>
    %102 = math.exp %101 : vector<16x16xf32>
    %cst_40 = arith.constant dense<0.000000e+00> : vector<16x3xf32>
    %103 = tpu.matmul %102, %86, %cst_40 {dimension_numbers = #tpu.dot_dimension_numbers<[1], [0], [0], [1], [0, 0, 1, 1], [], []>} : vector<16x16xf32>, vector<16x3xf32>, vector<16x3xf32> -> vector<16x3xf32>
    %104 = vector.extract_strided_slice %103 {offsets = [0, 0], sizes = [16, 2], strides = [1, 1]} : vector<16x3xf32> to vector<16x2xf32>
    %105 = vector.extract_strided_slice %103 {offsets = [0, 2], sizes = [16, 1], strides = [1, 1]} : vector<16x3xf32> to vector<16x1xf32>
    %106 = tpu.reciprocal %105 : vector<16x1xf32> -> vector<16x1xf32>
    %107 = vector.broadcast %106 : vector<16x1xf32> to vector<16x2xf32>
    %108 = arith.mulf %104, %107 : vector<16x2xf32>
    %cst_41 = arith.constant 0.000000e+00 : f32
    %109 = vector.broadcast %cst_41 : f32 to vector<16x2xf32>
    %110 = arith.addf %109, %108 : vector<16x2xf32>
    %cst_42 = arith.constant 1.000000e+00 : f32
    %111 = vector.broadcast %cst_42 : f32 to vector<16x2xf32>
    %112 = arith.divf %110, %111 : vector<16x2xf32>
    %113 = vector.broadcast %12 : vector<1x2xf32> to vector<16x2xf32>
    %114 = arith.addf %112, %113 : vector<16x2xf32>
    %cst_43 = arith.constant dense<0.000000e+00> : vector<16x16xf32>
    %115 = tpu.matmul %114, %13, %cst_43 {dimension_numbers = #tpu.dot_dimension_numbers<[1], [0], [0], [1], [0, 0, 1, 1], [], []>} : vector<16x2xf32>, vector<2x16xf32>, vector<16x16xf32> -> vector<16x16xf32>
    %116 = vector.broadcast %14 : vector<1x16xf32> to vector<16x16xf32>
    %117 = arith.addf %115, %116 : vector<16x16xf32>
    %cst_44 = arith.constant 0.000000e+00 : f32
    %118 = vector.broadcast %cst_44 : f32 to vector<16x16xf32>
    %119 = arith.cmpf ogt, %117, %118 : vector<16x16xf32>
    %cst_45 = arith.constant 0.000000e+00 : f32
    %120 = vector.broadcast %cst_45 : f32 to vector<16x16xf32>
    %121 = arith.minimumf %117, %120 : vector<16x16xf32>
    %122 = math.exp %121 : vector<16x16xf32>
    %cst_46 = arith.constant 1.000000e+00 : f32
    %123 = vector.broadcast %cst_46 : f32 to vector<16x16xf32>
    %124 = arith.subf %122, %123 : vector<16x16xf32>
    %125 = arith.select %119, %117, %124 : vector<16x16xi1>, vector<16x16xf32>
    %cst_47 = arith.constant dense<0.000000e+00> : vector<16x128xf32>
    %126 = tpu.matmul %125, %15, %cst_47 {dimension_numbers = #tpu.dot_dimension_numbers<[1], [0], [0], [1], [0, 0, 1, 1], [], []>} : vector<16x16xf32>, vector<16x128xf32>, vector<16x128xf32> -> vector<16x128xf32>
    %127 = vector.broadcast %16 : vector<1x128xf32> to vector<16x128xf32>
    %128 = arith.addf %126, %127 : vector<16x128xf32>
    %cst_48 = arith.constant dense<0.000000e+00> : vector<1x128xf32>
    %129 = tpu.matmul %17, %128, %cst_48 {dimension_numbers = #tpu.dot_dimension_numbers<[1], [0], [0], [1], [0, 0, 1, 1], [], []>} : vector<1x16xf32>, vector<16x128xf32>, vector<1x128xf32> -> vector<1x128xf32>
    %130 = vector.shape_cast %129 : vector<1x128xf32> to vector<1x128xf32>
    %131 = vector.broadcast %130 : vector<1x128xf32> to vector<8x128xf32>
    %c0_49 = arith.constant 0 : index
    %c0_50 = arith.constant 0 : index
    %c0_51 = arith.constant 0 : index
    %132 = vector.load %arg4[%c0_49, %c0_50, %c0_51] : memref<1x8x128xf32, #tpu.memory_space<vmem>>, vector<1x8x128xf32>
    %133 = vector.shape_cast %132 : vector<1x8x128xf32> to vector<8x128xf32>
    %134 = vector.shape_cast %131 : vector<8x128xf32> to vector<1x8x128xf32>
    tpu.vector_store %arg4[%c0_49, %c0_50, %c0_51], %134 {strides = array<i32>} : memref<1x8x128xf32, #tpu.memory_space<vmem>>, vector<1x8x128xf32>,
    return
  }
  func.func @transform_0(%arg0: i32) -> (i32, i32, i32) {
    %c0_i32 = arith.constant 0 : i32
    %c0_i32_0 = arith.constant 0 : i32
    %c0_i32_1 = arith.constant 0 : i32
    return %arg0, %c0_i32, %c0_i32_0 : i32, i32, i32
  }
  func.func @transform_1(%arg0: i32) -> (i32, i32, i32) {
    %c0_i32 = arith.constant 0 : i32
    %c0_i32_0 = arith.constant 0 : i32
    %c0_i32_1 = arith.constant 0 : i32
    return %arg0, %c0_i32, %c0_i32_0 : i32, i32, i32
  }
  func.func @transform_2(%arg0: i32) -> (i32, i32) {
    %c0_i32 = arith.constant 0 : i32
    %c0_i32_0 = arith.constant 0 : i32
    %c0_i32_1 = arith.constant 0 : i32
    return %c0_i32, %c0_i32_0 : i32, i32
  }
  func.func @transform_3(%arg0: i32) -> (i32, i32, i32) {
    %c0_i32 = arith.constant 0 : i32
    %c0_i32_0 = arith.constant 0 : i32
    %c0_i32_1 = arith.constant 0 : i32
    return %arg0, %c0_i32, %c0_i32_0 : i32, i32, i32
  }
}

</mosaic_0001>

<llo_original>
// kernel: gnn_forward.1
$region0: #{gnn_forward.1}
  #allocation0 [shape = 'u32[]', space=smem, size = 0x4, offset = 0x4, fixed_abs, tag = 'smem constant byte address 0x4 - core index']
  #allocation1 [shape = 'u32[144,128]{1,0:T(1,128)}', space=vmem, size = 0x12000, scoped, tag = 'internal scratch']
  %s0 = inlined_call_operand.hbm [shape: f32[4,16,32], index: 0, kind: input, shape index: {}]
  %s1 = inlined_call_operand.hbm [shape: s8[4,16,16], index: 1, kind: input, shape index: {}]
  %s2 = inlined_call_operand.hbm [shape: f32[168,128], index: 2, kind: input, shape index: {}]
  %s3 = inlined_call_operand.vmem [shape: f32[4,8,128], index: 3, kind: output, shape index: {}]
  %s4 = sld [smem:[#allocation0]]
  $region57: #{gnn_forward.1} parent=0
    _
  %s6 = ssub.s32 1, %s4
  %s7 = scalar_select 0, %s6, %s4
  $region1: #{gnn_forward.1} parent=0
    #allocation2 [shape = 'u8[16384]{0}', space=vmem, size = 0x4000, scoped, tag = 'input window, operand 0']
    #allocation3 [shape = 's32[2]{0}', space=sflag, size = 0x8, scoped, tag = 'scoped memory for gnn_forward.1']
    #allocation4 [shape = 'u8[4096]{0}', space=vmem, size = 0x1000, scoped, tag = 'input window, operand 1']
    #allocation5 [shape = 's32[2]{0}', space=sflag, size = 0x8, scoped, tag = 'scoped memory for gnn_forward.1']
    #allocation6 [shape = 'u8[86016]{0}', space=vmem, size = 0x15000, scoped, tag = 'input window, operand 2, single buffered']
    %8 = vsyncpa [#allocation3], 0
    %s9 = scalar_lea.sflag [#allocation3], 1
    %10 = vsyncpa %s9, 0
    %11 = vsyncpa [#allocation5], 0
    %s12 = scalar_lea.sflag [#allocation5], 1
    %13 = vsyncpa %s12, 0
    loop: start=0, step=1, limit=6
    $region2: #{gnn_forward.1} parent=1 // loop_pre_header
      _
    $region3: #{gnn_forward.1} parent=1 // loop_header
      %s15 = sphi 0, %s19
      %p16 = scmp.ge.s32.totalorder %s15, 6
      %s25 = sphi 0, %s27
      %s28 = sphi 0, %s25
      %s29 = sphi 0, %s28
      %s45 = sphi 0, %s29
      %s51 = sphi 0, %s53
      %s54 = sphi 0, %s51
      %s55 = sphi 0, %s54
      %s71 = sphi 0, %s55
      %s75 = sphi 0, %s75
      %s77 = sphi 0, %s75
      %s78 = sphi 0, %s77
      %s92 = sphi 0, %s78
      %s98 = sphi 0, %s100
      %s101 = sphi 0, %s98
      %s102 = sphi 0, %s101
      %s118 = sphi 0, %s102
    $region4: #{gnn_forward.1} parent=1 // loop_header_branch
      %18 = sbr.rel (%p16) target = $region8
    $region5: #{gnn_forward.1} parent=1 // loop_body
      %s20 = ssub.s32 %s15, 1
      %s21 = ssub.s32 %s15, 2
      %s22 = sadd.s32 %s15, 1
      %s23 = ssub.s32 %s15, %s22
      %p24 = scmp.eq.s32.totalorder %s23, 0
      %s26 = sadd.s32 %s25, 1
      %s27 = scalar_select %p24, %s25, %s26
      %p30 = pneg %p24
      %p31 = scmp.eq.s32.totalorder %s15, 3
      %p32 = por %p30, %p31
      %p33 = scmp.ne.s32.totalorder %s25, %s28
      %p34 = scmp.eq.s32.totalorder %s15, 0
      %p35 = por %p33, %p34
      %p36 = scmp.ne.s32.totalorder %s25, %s28
      %p37 = scmp.eq.s32.totalorder %s20, 3
      %p38 = por %p36, %p37
      %p39 = scmp.ne.s32.totalorder %s28, %s29
      %p40 = scmp.eq.s32.totalorder %s20, 0
      %p41 = por %p39, %p40
      %p42 = scmp.ne.s32.totalorder %s28, %s29
      %p43 = scmp.eq.s32.totalorder %s21, 3
      %p44 = por %p42, %p43
      %p46 = scmp.ne.s32.totalorder %s29, %s45
      %p47 = scmp.eq.s32.totalorder %s21, 0
      %p48 = por %p46, %p47
      %s49 = ssub.s32 %s15, %s22
      %p50 = scmp.eq.s32.totalorder %s49, 0
      %s52 = sadd.s32 %s51, 1
      %s53 = scalar_select %p50, %s51, %s52
      %p56 = pneg %p50
      %p57 = scmp.eq.s32.totalorder %s15, 3
      %p58 = por %p56, %p57
      %p59 = scmp.ne.s32.totalorder %s51, %s54
      %p60 = scmp.eq.s32.totalorder %s15, 0
      %p61 = por %p59, %p60
      %p62 = scmp.ne.s32.totalorder %s51, %s54
      %p63 = scmp.eq.s32.totalorder %s20, 3
      %p64 = por %p62, %p63
      %p65 = scmp.ne.s32.totalorder %s54, %s55
      %p66 = scmp.eq.s32.totalorder %s20, 0
      %p67 = por %p65, %p66
      %p68 = scmp.ne.s32.totalorder %s54, %s55
      %p69 = scmp.eq.s32.totalorder %s21, 3
      %p70 = por %p68, %p69
      %p72 = scmp.ne.s32.totalorder %s55, %s71
      %p73 = scmp.eq.s32.totalorder %s21, 0
      %p74 = por %p72, %p73
      %s76 = sadd.s32 %s75, 1
      %p79 = scmp.eq.s32.totalorder %s15, 3
      %p80 = scmp.ne.s32.totalorder %s75, %s77
      %p81 = scmp.eq.s32.totalorder %s15, 0
      %p82 = por %p80, %p81
      %p83 = scmp.ne.s32.totalorder %s75, %s77
      %p84 = scmp.eq.s32.totalorder %s20, 3
      %p85 = por %p83, %p84
      %p86 = scmp.ne.s32.totalorder %s77, %s78
      %p87 = scmp.eq.s32.totalorder %s20, 0
      %p88 = por %p86, %p87
      %p89 = scmp.ne.s32.totalorder %s77, %s78
      %p90 = scmp.eq.s32.totalorder %s21, 3
      %p91 = por %p89, %p90
      %p93 = scmp.ne.s32.totalorder %s78, %s92
      %p94 = scmp.eq.s32.totalorder %s21, 0
      %p95 = por %p93, %p94
      %s96 = ssub.s32 %s15, %s22
      %p97 = scmp.eq.s32.totalorder %s96, 0
      %s99 = sadd.s32 %s98, 1
      %s100 = scalar_select %p97, %s98, %s99
      %p103 = pneg %p97
      %p104 = scmp.eq.s32.totalorder %s15, 3
      %p105 = por %p103, %p104
      %p106 = scmp.ne.s32.totalorder %s98, %s101
      %p107 = scmp.eq.s32.totalorder %s15, 0
      %p108 = por %p106, %p107
      %p109 = scmp.ne.s32.totalorder %s98, %s101
      %p110 = scmp.eq.s32.totalorder %s20, 3
      %p111 = por %p109, %p110
      %p112 = scmp.ne.s32.totalorder %s101, %s102
      %p113 = scmp.eq.s32.totalorder %s20, 0
      %p114 = por %p112, %p113
      %p115 = scmp.ne.s32.totalorder %s101, %s102
      %p116 = scmp.eq.s32.totalorder %s21, 3
      %p117 = por %p115, %p116
      %p119 = scmp.ne.s32.totalorder %s102, %s118
      %p120 = scmp.eq.s32.totalorder %s21, 0
      %p121 = por %p119, %p120
      %p122 = scmp.le.s32.totalorder 1, %s15
      %p123 = scmp.lt.s32.totalorder %s15, 5
      %p124 = pnand %p122, %p123
      %p125 = pneg %p124
      // Predicated region
      $region9: #{gnn_forward.1} parent=5 // pred_check
        _
      $region10: #{gnn_forward.1} parent=5 // pred_check_branch
        %127 = sbr.rel (%p124) target = $region12
      $region11: #{gnn_forward.1} parent=5 // pred_region
        %s128 = ssub.s32 %s15, 1
        // Predicated region
        $region13: #{gnn_forward.1} parent=11 // pred_check
          %p129 = pneg %p88
        $region14: #{gnn_forward.1} parent=11 // pred_check_branch
          %131 = sbr.rel (%p129) target = $region16
        $region15: #{gnn_forward.1} parent=11 // pred_region
          %s133 = ssub.s32 2688, 2688
          %134 = vsyncadd [#allocation5], %s133
          %s135 = sshll.u32 [#allocation6], 4
          %s136 = int_to_ptr.vmem [resolvable:$true] %s135
          %141 = dma.hbm_to_vmem [thread:$0]  %s2, 2688, %s136, [#allocation5], 128, 128, 8
        $region16: #{gnn_forward.1} parent=11 // pred_fallthru
          _
      $region12: #{gnn_forward.1} parent=5 // pred_fallthru
        _
      %p142 = scmp.lt.s32.totalorder %s15, 4
      // Predicated region
      $region17: #{gnn_forward.1} parent=5 // pred_check
        %p143 = pneg %p142
      $region18: #{gnn_forward.1} parent=5 // pred_check_branch
        %145 = sbr.rel (%p143) target = $region20
      $region19: #{gnn_forward.1} parent=5 // pred_region
        // Predicated region
        $region21: #{gnn_forward.1} parent=19 // pred_check
          %p146 = pneg %p35
        $region22: #{gnn_forward.1} parent=19 // pred_check_branch
          %148 = sbr.rel (%p146) target = $region24
        $region23: #{gnn_forward.1} parent=19 // pred_region
          %s149 = sand.u32 %s25, 1
          %s150 = scalar_lea.sflag [#allocation3], %s149
          %s151 = sand.u32 %s25, 1
          %s152 = smul.addr %s151, 16
          %s153 = scalar_lea.vmem [#allocation2], %s152
          %s155 = ssub.s32 256, 256
          %156 = vsyncadd %s150, %s155
          %s157 = smul.addr %s15, 2
          %s158 = smul.addr %s157, 128
          %s159 = scalar_lea.hbm %s0, %s158
          %s160 = sshll.u32 %s153, 4
          %s161 = int_to_ptr.vmem [resolvable:$true] %s160
          %166 = dma.hbm_to_vmem [thread:$0]  %s159, 256, %s161, %s150, 128, 128, 8
        $region24: #{gnn_forward.1} parent=19 // pred_fallthru
          _
        // Predicated region
        $region25: #{gnn_forward.1} parent=19 // pred_check
          %p167 = pneg %p61
        $region26: #{gnn_forward.1} parent=19 // pred_check_branch
          %169 = sbr.rel (%p167) target = $region28
        $region27: #{gnn_forward.1} parent=19 // pred_region
          %s170 = sand.u32 %s15, 1
          %s171 = scalar_lea.sflag [#allocation5], %s170
          %s172 = sand.u32 %s51, 1
          %s173 = smul.addr %s172, 4
          %s174 = scalar_lea.vmem [#allocation4], %s173
          %s176 = ssub.s32 64, 64
          %177 = vsyncadd %s171, %s176
          %s178 = smul.addr %s15, 2
          %s179 = smul.addr %s178, 32
          %s180 = scalar_lea.hbm %s1, %s179
          %s181 = sshll.u32 %s174, 4
          %s182 = int_to_ptr.vmem [resolvable:$true] %s181
          %187 = dma.hbm_to_vmem [thread:$0]  %s180, 64, %s182, %s171, 32, 32, 2
        $region28: #{gnn_forward.1} parent=19 // pred_fallthru
          _
      $region20: #{gnn_forward.1} parent=5 // pred_fallthru
        _
      %p188 = scmp.le.s32.totalorder 1, %s15
      %p189 = scmp.lt.s32.totalorder %s15, 5
      %p190 = pnand %p188, %p189
      %p191 = pneg %p190
      // Predicated region
      $region29: #{gnn_forward.1} parent=5 // pred_check
        _
      $region30: #{gnn_forward.1} parent=5 // pred_check_branch
        %193 = sbr.rel (%p190) target = $region32
      $region31: #{gnn_forward.1} parent=5 // pred_region
        %s194 = ssub.s32 %s15, 1
        %s195 = sand.u32 %s28, 1
        %s196 = scalar_lea.sflag [#allocation3], %s195
        %s197 = sand.u32 %s28, 1
        %s198 = smul.addr %s197, 16
        %s199 = scalar_lea.vmem [#allocation2], %s198
        // Predicated region
        $region33: #{gnn_forward.1} parent=31 // pred_check
          %p200 = pneg %p41
        $region34: #{gnn_forward.1} parent=31 // pred_check_branch
          %202 = sbr.rel (%p200) target = $region36
        $region35: #{gnn_forward.1} parent=31 // pred_region
          %203 = dma.done %s196, 256
        $region36: #{gnn_forward.1} parent=31 // pred_fallthru
          _
        %s204 = sand.u32 %s20, 1
        %s205 = scalar_lea.sflag [#allocation5], %s204
        %s206 = sand.u32 %s54, 1
        %s207 = smul.addr %s206, 4
        %s208 = scalar_lea.vmem [#allocation4], %s207
        // Predicated region
        $region37: #{gnn_forward.1} parent=31 // pred_check
          %p209 = pneg %p67
        $region38: #{gnn_forward.1} parent=31 // pred_check_branch
          %211 = sbr.rel (%p209) target = $region40
        $region39: #{gnn_forward.1} parent=31 // pred_region
          %212 = dma.done %s205, 64
        $region40: #{gnn_forward.1} parent=31 // pred_fallthru
          _
        // Predicated region
        $region41: #{gnn_forward.1} parent=31 // pred_check
          %p213 = pneg %p88
        $region42: #{gnn_forward.1} parent=31 // pred_check_branch
          %215 = sbr.rel (%p213) target = $region44
        $region43: #{gnn_forward.1} parent=31 // pred_region
          %216 = dma.done [#allocation5], 2688
        $region44: #{gnn_forward.1} parent=31 // pred_fallthru
          _
        %s217 = sand.u32 %s28, 1
        %s218 = scalar_lea.sflag [#allocation3], %s217
        %s219 = sand.u32 %s28, 1
        %s220 = smul.addr %s219, 16
        %s221 = scalar_lea.vmem [#allocation2], %s220
        %p222 = pneg %p41
        %p223 = pneg %p38
        %s224 = sand.u32 %s20, 1
        %s225 = scalar_lea.sflag [#allocation5], %s224
        %s226 = sand.u32 %s54, 1
        %s227 = smul.addr %s226, 4
        %s228 = scalar_lea.vmem [#allocation4], %s227
        %p229 = pneg %p67
        %p230 = pneg %p64
        %p231 = pneg %p88
        %p232 = pneg %p85
        %p233 = pneg %p114
        %p234 = pneg %p111
        %p235 = scmp.lt.s32.totalorder %s20, 3
        %s236 = scalar_select %p235, %s20, 3
        %s237 = smul.addr %s236, 8
        %s238 = scalar_lea.vmem %s3, %s237
        %p239 = scmp.lt.s32.totalorder %s20, 3
        %s240 = scalar_select %p239, %s20, 3
        %s241 = smul.addr %s240, 8
        %s242 = scalar_lea.vmem %s3, %s241
        %v243 = vld [vmem:[%s199] sm:$0xff]
        %v244 = vld [vmem:[%s199 + $0x8] sm:$0xff]
        %v245 = vld [vmem:[%s208] sm:$0x3]
        %v246 = vld [vmem:[%s208 + $0x2] sm:$0x3]
        %v247 = vunpack.c.0.s8 %v245
        %v248 = vunpack.c.0.s8 %v246
        %v249 = vcvt.s32.f32 %v247
        %v250 = vcvt.s32.f32 %v248
        %vm251 = vcmp.gt.f32.partialorder %v249, 0.0
        %vm252 = vcmp.gt.f32.partialorder %v250, 0.0
        %v253 = vld [vmem:[#allocation6] sm:$0xff]
        %v254 = vld [vmem:[#allocation6 + $0x8] sm:$0xff]
        %v255 = vld [vmem:[#allocation6 + $0x10] sm:$0xff]
        %v256 = vld [vmem:[#allocation6 + $0x18] sm:$0xff]
        %v257 = vld [vmem:[#allocation6 + $0x20] sm:$0xff]
        %v258 = vld [vmem:[#allocation6 + $0x28] sm:$0xff]
        %v259 = vld [vmem:[#allocation6 + $0x30] sm:$0xff]
        %v260 = vld [vmem:[#allocation6 + $0x38] sm:$0xff]
        %v261 = vld [vmem:[#allocation6 + $0x40] sm:$0x1]
        %v262 = vld [vmem:[#allocation6 + $0x48] sm:$0xff]
        %v263 = vld [vmem:[#allocation6 + $0x50] sm:$0xff]
        %v264 = vld [vmem:[#allocation6 + $0x58] sm:$0xff]
        %v265 = vld [vmem:[#allocation6 + $0x60] sm:$0xff]
        %v266 = vld [vmem:[#allocation6 + $0x68] sm:$0x3]
        %v267 = vld [vmem:[#allocation6 + $0x70] sm:$0x1]
        %v268 = vld [vmem:[#allocation6 + $0x78] sm:$0x3]
        %v269 = vld [vmem:[#allocation6 + $0x80] sm:$0x1]
        %v270 = vld [vmem:[#allocation6 + $0x88] sm:$0xff]
        %v271 = vld [vmem:[#allocation6 + $0x90] sm:$0xff]
        %v272 = vld [vmem:[#allocation6 + $0x98] sm:$0x1]
        %v273 = vld [vmem:[#allocation6 + $0xa0] sm:$0x1]
        %vm274 = vcmask 261120
        %v276 = vsel %vm274, %v243, 0
        %v279 = vsel %vm274, %v244, 0
        %281 = vmatprep.subr.mxu0 0.0
        %282 = vmatpush1.msra.mxu0 %v253
        %283 = vmatprep.subr.mxu0 0.0
        %284 = vmatpush1.msra.mxu0 %v254
        %285 = vmatprep.subr.mxu0 0.0
        %286 = vmatpush1.msra.mxu0 %v255
        %287 = vmatprep.subr.mxu0 0.0
        %288 = vmatpush1.msra.mxu0 %v256
        %289 = vmatprep.subr.mxu0 0.0
        %290 = vmatpush1.msra.mxu0 0.0
        %291 = vmatprep.subr.mxu0 0.0
        %292 = vmatpush1.msra.mxu0 0.0
        %293 = vmatprep.subr.mxu0 0.0
        %294 = vmatpush1.msra.mxu0 0.0
        %295 = vmatprep.subr.mxu0 0.0
        %296 = vmatpush1.msra.mxu0 0.0
        %297 = vmatprep.subr.mxu0 0.0
        %298 = vmatpush1.msra.mxu0 0.0
        %299 = vmatprep.subr.mxu0 0.0
        %300 = vmatpush1.msra.mxu0 0.0
        %301 = vmatprep.subr.mxu0 0.0
        %302 = vmatpush1.msra.mxu0 0.0
        %303 = vmatprep.subr.mxu0 0.0
        %304 = vmatpush1.msra.mxu0 0.0
        %305 = vmatprep.subr.mxu0 0.0
        %306 = vmatpush1.msra.mxu0 0.0
        %307 = vmatprep.subr.mxu0 0.0
        %308 = vmatpush1.msra.mxu0 0.0
        %309 = vmatprep.subr.mxu0 0.0
        %310 = vmatpush1.msra.mxu0 0.0
        %311 = vmatprep.subr.mxu0 0.0
        %312 = vmatpush1.msra.mxu0 0.0
        %313 = vmatprep.subr.mxu0 0.0
        %314 = vmatpush1.msra.mxu0 0.0
        %315 = vmatprep.subr.mxu0 0.0
        %316 = vmatpush1.msra.mxu0 0.0
        %317 = vmatprep.subr.mxu0 0.0
        %318 = vmatpush1.msra.mxu0 0.0
        %319 = vmatprep.subr.mxu0 0.0
        %320 = vmatpush1.msra.mxu0 0.0
        %321 = vmatprep.subr.mxu0 0.0
        %322 = vmatpush1.msra.mxu0 0.0
        %323 = vmatprep.subr.mxu0 0.0
        %324 = vmatpush1.msra.mxu0 0.0
        %325 = vmatprep.subr.mxu0 0.0
        %326 = vmatpush1.msra.mxu0 0.0
        %327 = vmatprep.subr.mxu0 0.0
        %328 = vmatpush1.msra.mxu0 0.0
        %329 = vmatprep.subr.mxu0 0.0
        %330 = vmatpush1.msra.mxu0 0.0
        %331 = vmatprep.subr.mxu0 0.0
        %332 = vmatpush1.msra.mxu0 0.0
        %333 = vmatprep.subr.mxu0 0.0
        %334 = vmatpush1.msra.mxu0 0.0
        %335 = vmatprep.subr.mxu0 0.0
        %336 = vmatpush1.msra.mxu0 0.0
        %337 = vmatprep.subr.mxu0 0.0
        %338 = vmatpush1.msra.mxu0 0.0
        %339 = vmatprep.subr.mxu0 0.0
        %340 = vmatpush1.msra.mxu0 0.0
        %341 = vmatprep.subr.mxu0 0.0
        %342 = vmatpush1.msra.mxu0 0.0
        %343 = vmatprep.subr.mxu0 0.0
        %344 = vmatpush1.msra.mxu0 0.0
        %345 = vmatprep.mubr.f32.mxu0 0.0
        %346 = vmatmul.mubr.f32.gmra.mrb[0].mxu0 %v276
        %v347 = vpop.f32.mrb[0].mxu0
        %v348 = vadd.f32 0.0, %v347
        %v349 = vpop.f32.mrb[0].mxu0
        %350 = vmatprep.mubr.f32.mxu0 0.0
        %351 = vmatmul.mubr.f32.gmra.mrb[0].mxu0 %v279
        %v352 = vpop.f32.mrb[0].mxu0
        %v353 = vadd.f32 0.0, %v352
        %v354 = vpop.f32.mrb[0].mxu0
        %355 = vdwg.mxu0
        %v357 = vsel %vm274, %v348, 0
        %v360 = vsel %vm274, %v353, 0
        %362 = vmatprep.subr.mxu0 0.0
        %363 = vmatpush1.msra.mxu0 %v257
        %364 = vmatprep.subr.mxu0 0.0
        %365 = vmatpush1.msra.mxu0 %v258
        %366 = vmatprep.subr.mxu0 0.0
        %367 = vmatpush1.msra.mxu0 %v259
        %368 = vmatprep.subr.mxu0 0.0
        %369 = vmatpush1.msra.mxu0 %v260
        %370 = vmatprep.subr.mxu0 0.0
        %371 = vmatpush1.msra.mxu0 0.0
        %372 = vmatprep.subr.mxu0 0.0
        %373 = vmatpush1.msra.mxu0 0.0
        %374 = vmatprep.subr.mxu0 0.0
        %375 = vmatpush1.msra.mxu0 0.0
        %376 = vmatprep.subr.mxu0 0.0
        %377 = vmatpush1.msra.mxu0 0.0
        %378 = vmatprep.subr.mxu0 0.0
        %379 = vmatpush1.msra.mxu0 0.0
        %380 = vmatprep.subr.mxu0 0.0
        %381 = vmatpush1.msra.mxu0 0.0
        %382 = vmatprep.subr.mxu0 0.0
        %383 = vmatpush1.msra.mxu0 0.0
        %384 = vmatprep.subr.mxu0 0.0
        %385 = vmatpush1.msra.mxu0 0.0
        %386 = vmatprep.subr.mxu0 0.0
        %387 = vmatpush1.msra.mxu0 0.0
        %388 = vmatprep.subr.mxu0 0.0
        %389 = vmatpush1.msra.mxu0 0.0
        %390 = vmatprep.subr.mxu0 0.0
        %391 = vmatpush1.msra.mxu0 0.0
        %392 = vmatprep.subr.mxu0 0.0
        %393 = vmatpush1.msra.mxu0 0.0
        %394 = vmatprep.subr.mxu0 0.0
        %395 = vmatpush1.msra.mxu0 0.0
        %396 = vmatprep.subr.mxu0 0.0
        %397 = vmatpush1.msra.mxu0 0.0
        %398 = vmatprep.subr.mxu0 0.0
        %399 = vmatpush1.msra.mxu0 0.0
        %400 = vmatprep.subr.mxu0 0.0
        %401 = vmatpush1.msra.mxu0 0.0
        %402 = vmatprep.subr.mxu0 0.0
        %403 = vmatpush1.msra.mxu0 0.0
        %404 = vmatprep.subr.mxu0 0.0
        %405 = vmatpush1.msra.mxu0 0.0
        %406 = vmatprep.subr.mxu0 0.0
        %407 = vmatpush1.msra.mxu0 0.0
        %408 = vmatprep.subr.mxu0 0.0
        %409 = vmatpush1.msra.mxu0 0.0
        %410 = vmatprep.subr.mxu0 0.0
        %411 = vmatpush1.msra.mxu0 0.0
        %412 = vmatprep.subr.mxu0 0.0
        %413 = vmatpush1.msra.mxu0 0.0
        %414 = vmatprep.subr.mxu0 0.0
        %415 = vmatpush1.msra.mxu0 0.0
        %416 = vmatprep.subr.mxu0 0.0
        %417 = vmatpush1.msra.mxu0 0.0
        %418 = vmatprep.subr.mxu0 0.0
        %419 = vmatpush1.msra.mxu0 0.0
        %420 = vmatprep.subr.mxu0 0.0
        %421 = vmatpush1.msra.mxu0 0.0
        %422 = vmatprep.subr.mxu0 0.0
        %423 = vmatpush1.msra.mxu0 0.0
        %424 = vmatprep.subr.mxu0 0.0
        %425 = vmatpush1.msra.mxu0 0.0
        %426 = vmatprep.mubr.f32.mxu0 0.0
        %427 = vmatmul.mubr.f32.gmra.mrb[0].mxu0 %v357
        %v428 = vpop.f32.mrb[0].mxu0
        %v429 = vadd.f32 0.0, %v428
        %v430 = vpop.f32.mrb[0].mxu0
        %431 = vmatprep.mubr.f32.mxu0 0.0
        %432 = vmatmul.mubr.f32.gmra.mrb[0].mxu0 %v360
        %v433 = vpop.f32.mrb[0].mxu0
        %v434 = vadd.f32 0.0, %v433
        %v435 = vpop.f32.mrb[0].mxu0
        %436 = vdwg.mxu0
        %437 = vxpose.xlu0.b32.start [1/16] %v429, 128
        %438 = vxpose.xlu0.b32.cont [2/16] %v434, 128
        %439 = vxpose.xlu0.b32.cont [3/16] 0.0, 128
        %440 = vxpose.xlu0.b32.cont [4/16] 0.0, 128
        %441 = vxpose.xlu0.b32.cont [5/16] 0.0, 128
        %442 = vxpose.xlu0.b32.cont [6/16] 0.0, 128
        %443 = vxpose.xlu0.b32.cont [7/16] 0.0, 128
        %444 = vxpose.xlu0.b32.cont [8/16] 0.0, 128
        %445 = vxpose.xlu0.b32.cont [9/16] 0.0, 128
        %446 = vxpose.xlu0.b32.cont [10/16] 0.0, 128
        %447 = vxpose.xlu0.b32.cont [11/16] 0.0, 128
        %448 = vxpose.xlu0.b32.cont [12/16] 0.0, 128
        %449 = vxpose.xlu0.b32.cont [13/16] 0.0, 128
        %450 = vxpose.xlu0.b32.cont [14/16] 0.0, 128
        %451 = vxpose.xlu0.b32.cont [15/16] 0.0, 128
        %452 = vxpose.xlu0.b32.end [16/16] 0.0, 128
        %v453 = vpop.trf.xlu0
        %v454 = vpop.trf.xlu0
        %v455 = vpop.trf.xlu0
        %v456 = vpop.trf.xlu0
        %v457 = vpop.trf.xlu0
        %v458 = vpop.trf.xlu0
        %v459 = vpop.trf.xlu0
        %v460 = vpop.trf.xlu0
        %v461 = vpop.trf.xlu0
        %v462 = vpop.trf.xlu0
        %v463 = vpop.trf.xlu0
        %v464 = vpop.trf.xlu0
        %v465 = vpop.trf.xlu0
        %v466 = vpop.trf.xlu0
        %v467 = vpop.trf.xlu0
        %v468 = vpop.trf.xlu0
        %v469 = vsel %vm274, %v348, 1.0
        %v470 = vsel %vm274, %v353, 1.0
        %472 = vset.pattern.permute.xlu0 2
        %473 = vperm.xlu0 %472, %v429
        %v474 = vpop.permute.xlu0 %473
        %477 = vset.pattern.permute.xlu0 2
        %478 = vperm.xlu0 %477, %v434
        %v479 = vpop.permute.xlu0 %478
        %v481 = vlaneseq
        %v482 = vshrl.u32 %v481, 7
        %v483 = vsub.s32 0, %v482
        %v484 = vrot.slane %v453, %v483
        %v485 = vadd.f32 %v474, %v484
        %v486 = vadd.f32 %v479, %v484
        %vm487 = vcmp.gt.f32.partialorder %v485, 0.0
        %vm488 = vcmp.gt.f32.partialorder %v486, 0.0
        %v489 = vmul.f32 %v485, 0.2
        %v490 = vmul.f32 %v486, 0.2
        %v491 = vsel %vm487, %v485, %v489
        %v492 = vsel %vm488, %v486, %v490
        %v493 = vsel %vm251, %v491, -1e+30
        %v494 = vsel %vm252, %v492, -1e+30
        %vm495 = vcmask 130048
        %v496 = vsel %vm495, %v493, -inf
        %497 = vmax.xlane.f32.xlu0 %v496
        %v498 = vpop.xlane.xlu0 %497
        %v499 = vsel %vm495, %v494, -inf
        %500 = vmax.xlane.f32.xlu0 %v499
        %v501 = vpop.xlane.xlu0 %500
        %v502 = vsub.f32 %v493, %v498
        %v503 = vsub.f32 %v494, %v501
        %v504 = vmul.f32 %v502, 1.442695
        %v505 = vpow.pop %v504
        %v506 = vmul.f32 %v503, 1.442695
        %v507 = vpow.pop %v506
        %v509 = vsel %vm495, %v505, 0
        %v512 = vsel %vm495, %v507, 0
        %514 = vmatprep.subr.mxu0 0.0
        %515 = vmatpush1.msra.mxu0 %v469
        %516 = vmatprep.subr.mxu0 0.0
        %517 = vmatpush1.msra.mxu0 %v470
        %518 = vmatprep.subr.mxu0 0.0
        %519 = vmatpush1.msra.mxu0 0.0
        %520 = vmatprep.subr.mxu0 0.0
        %521 = vmatpush1.msra.mxu0 0.0
        %522 = vmatprep.subr.mxu0 0.0
        %523 = vmatpush1.msra.mxu0 0.0
        %524 = vmatprep.subr.mxu0 0.0
        %525 = vmatpush1.msra.mxu0 0.0
        %526 = vmatprep.subr.mxu0 0.0
        %527 = vmatpush1.msra.mxu0 0.0
        %528 = vmatprep.subr.mxu0 0.0
        %529 = vmatpush1.msra.mxu0 0.0
        %530 = vmatprep.subr.mxu0 0.0
        %531 = vmatpush1.msra.mxu0 0.0
        %532 = vmatprep.subr.mxu0 0.0
        %533 = vmatpush1.msra.mxu0 0.0
        %534 = vmatprep.subr.mxu0 0.0
        %535 = vmatpush1.msra.mxu0 0.0
        %536 = vmatprep.subr.mxu0 0.0
        %537 = vmatpush1.msra.mxu0 0.0
        %538 = vmatprep.subr.mxu0 0.0
        %539 = vmatpush1.msra.mxu0 0.0
        %540 = vmatprep.subr.mxu0 0.0
        %541 = vmatpush1.msra.mxu0 0.0
        %542 = vmatprep.subr.mxu0 0.0
        %543 = vmatpush1.msra.mxu0 0.0
        %544 = vmatprep.subr.mxu0 0.0
        %545 = vmatpush1.msra.mxu0 0.0
        %546 = vmatprep.subr.mxu0 0.0
        %547 = vmatpush1.msra.mxu0 0.0
        %548 = vmatprep.subr.mxu0 0.0
        %549 = vmatpush1.msra.mxu0 0.0
        %550 = vmatprep.subr.mxu0 0.0
        %551 = vmatpush1.msra.mxu0 0.0
        %552 = vmatprep.subr.mxu0 0.0
        %553 = vmatpush1.msra.mxu0 0.0
        %554 = vmatprep.subr.mxu0 0.0
        %555 = vmatpush1.msra.mxu0 0.0
        %556 = vmatprep.subr.mxu0 0.0
        %557 = vmatpush1.msra.mxu0 0.0
        %558 = vmatprep.subr.mxu0 0.0
        %559 = vmatpush1.msra.mxu0 0.0
        %560 = vmatprep.subr.mxu0 0.0
        %561 = vmatpush1.msra.mxu0 0.0
        %562 = vmatprep.subr.mxu0 0.0
        %563 = vmatpush1.msra.mxu0 0.0
        %564 = vmatprep.subr.mxu0 0.0
        %565 = vmatpush1.msra.mxu0 0.0
        %566 = vmatprep.subr.mxu0 0.0
        %567 = vmatpush1.msra.mxu0 0.0
        %568 = vmatprep.subr.mxu0 0.0
        %569 = vmatpush1.msra.mxu0 0.0
        %570 = vmatprep.subr.mxu0 0.0
        %571 = vmatpush1.msra.mxu0 0.0
        %572 = vmatprep.subr.mxu0 0.0
        %573 = vmatpush1.msra.mxu0 0.0
        %574 = vmatprep.subr.mxu0 0.0
        %575 = vmatpush1.msra.mxu0 0.0
        %576 = vmatprep.subr.mxu0 0.0
        %577 = vmatpush1.msra.mxu0 0.0
        %578 = vmatprep.mubr.f32.mxu0 0.0
        %579 = vmatmul.mubr.f32.gmra.mrb[0].mxu0 %v509
        %v580 = vpop.f32.mrb[0].mxu0
        %v581 = vadd.f32 0.0, %v580
        %v582 = vpop.f32.mrb[0].mxu0
        %583 = vmatprep.mubr.f32.mxu0 0.0
        %584 = vmatmul.mubr.f32.gmra.mrb[0].mxu0 %v512
        %v585 = vpop.f32.mrb[0].mxu0
        %v586 = vadd.f32 0.0, %v585
        %v587 = vpop.f32.mrb[0].mxu0
        %588 = vdwg.mxu0
        %v589 = vrcp.pop %v581
        %v590 = vrcp.pop %v586
        %592 = vset.pattern.permute.xlu0 32
        %593 = vperm.xlu0 %592, %v589
        %v594 = vpop.permute.xlu0 %593
        %597 = vset.pattern.permute.xlu0 32
        %598 = vperm.xlu0 %597, %v590
        %v599 = vpop.permute.xlu0 %598
        %v601 = vmul.f32 %v581, %v594
        %v602 = vmul.f32 %v586, %v599
        %603 = vset.pattern.permute.xlu0 3
        %604 = vperm.xlu0 %603, %v429
        %v605 = vpop.permute.xlu0 %604
        %607 = vset.pattern.permute.xlu0 3
        %608 = vperm.xlu0 %607, %v434
        %v609 = vpop.permute.xlu0 %608
        %v611 = vlaneseq
        %v612 = vshrl.u32 %v611, 7
        %v613 = vsub.s32 1, %v612
        %v614 = vrot.slane %v453, %v613
        %v615 = vadd.f32 %v605, %v614
        %v616 = vadd.f32 %v609, %v614
        %vm617 = vcmp.gt.f32.partialorder %v615, 0.0
        %vm618 = vcmp.gt.f32.partialorder %v616, 0.0
        %v619 = vmul.f32 %v615, 0.2
        %v620 = vmul.f32 %v616, 0.2
        %v621 = vsel %vm617, %v615, %v619
        %v622 = vsel %vm618, %v616, %v620
        %v623 = vsel %vm251, %v621, -1e+30
        %v624 = vsel %vm252, %v622, -1e+30
        %v625 = vsel %vm495, %v623, -inf
        %626 = vmax.xlane.f32.xlu0 %v625
        %v627 = vpop.xlane.xlu0 %626
        %v628 = vsel %vm495, %v624, -inf
        %629 = vmax.xlane.f32.xlu0 %v628
        %v630 = vpop.xlane.xlu0 %629
        %v631 = vsub.f32 %v623, %v627
        %v632 = vsub.f32 %v624, %v630
        %v633 = vmul.f32 %v631, 1.442695
        %v634 = vpow.pop %v633
        %v635 = vmul.f32 %v632, 1.442695
        %v636 = vpow.pop %v635
        %v638 = vsel %vm495, %v634, 0
        %v641 = vsel %vm495, %v636, 0
        %643 = vmatprep.subr.mxu0 0.0
        %644 = vmatpush1.msra.mxu0 %v469
        %645 = vmatprep.subr.mxu0 0.0
        %646 = vmatpush1.msra.mxu0 %v470
        %647 = vmatprep.subr.mxu0 0.0
        %648 = vmatpush1.msra.mxu0 0.0
        %649 = vmatprep.subr.mxu0 0.0
        %650 = vmatpush1.msra.mxu0 0.0
        %651 = vmatprep.subr.mxu0 0.0
        %652 = vmatpush1.msra.mxu0 0.0
        %653 = vmatprep.subr.mxu0 0.0
        %654 = vmatpush1.msra.mxu0 0.0
        %655 = vmatprep.subr.mxu0 0.0
        %656 = vmatpush1.msra.mxu0 0.0
        %657 = vmatprep.subr.mxu0 0.0
        %658 = vmatpush1.msra.mxu0 0.0
        %659 = vmatprep.subr.mxu0 0.0
        %660 = vmatpush1.msra.mxu0 0.0
        %661 = vmatprep.subr.mxu0 0.0
        %662 = vmatpush1.msra.mxu0 0.0
        %663 = vmatprep.subr.mxu0 0.0
        %664 = vmatpush1.msra.mxu0 0.0
        %665 = vmatprep.subr.mxu0 0.0
        %666 = vmatpush1.msra.mxu0 0.0
        %667 = vmatprep.subr.mxu0 0.0
        %668 = vmatpush1.msra.mxu0 0.0
        %669 = vmatprep.subr.mxu0 0.0
        %670 = vmatpush1.msra.mxu0 0.0
        %671 = vmatprep.subr.mxu0 0.0
        %672 = vmatpush1.msra.mxu0 0.0
        %673 = vmatprep.subr.mxu0 0.0
        %674 = vmatpush1.msra.mxu0 0.0
        %675 = vmatprep.subr.mxu0 0.0
        %676 = vmatpush1.msra.mxu0 0.0
        %677 = vmatprep.subr.mxu0 0.0
        %678 = vmatpush1.msra.mxu0 0.0
        %679 = vmatprep.subr.mxu0 0.0
        %680 = vmatpush1.msra.mxu0 0.0
        %681 = vmatprep.subr.mxu0 0.0
        %682 = vmatpush1.msra.mxu0 0.0
        %683 = vmatprep.subr.mxu0 0.0
        %684 = vmatpush1.msra.mxu0 0.0
        %685 = vmatprep.subr.mxu0 0.0
        %686 = vmatpush1.msra.mxu0 0.0
        %687 = vmatprep.subr.mxu0 0.0
        %688 = vmatpush1.msra.mxu0 0.0
        %689 = vmatprep.subr.mxu0 0.0
        %690 = vmatpush1.msra.mxu0 0.0
        %691 = vmatprep.subr.mxu0 0.0
        %692 = vmatpush1.msra.mxu0 0.0
        %693 = vmatprep.subr.mxu0 0.0
        %694 = vmatpush1.msra.mxu0 0.0
        %695 = vmatprep.subr.mxu0 0.0
        %696 = vmatpush1.msra.mxu0 0.0
        %697 = vmatprep.subr.mxu0 0.0
        %698 = vmatpush1.msra.mxu0 0.0
        %699 = vmatprep.subr.mxu0 0.0
        %700 = vmatpush1.msra.mxu0 0.0
        %701 = vmatprep.subr.mxu0 0.0
        %702 = vmatpush1.msra.mxu0 0.0
        %703 = vmatprep.subr.mxu0 0.0
        %704 = vmatpush1.msra.mxu0 0.0
        %705 = vmatprep.subr.mxu0 0.0
        %706 = vmatpush1.msra.mxu0 0.0
        %707 = vmatprep.mubr.f32.mxu0 0.0
        %708 = vmatmul.mubr.f32.gmra.mrb[0].mxu0 %v638
        %v709 = vpop.f32.mrb[0].mxu0
        %v710 = vadd.f32 0.0, %v709
        %v711 = vpop.f32.mrb[0].mxu0
        %712 = vmatprep.mubr.f32.mxu0 0.0
        %713 = vmatmul.mubr.f32.gmra.mrb[0].mxu0 %v641
        %v714 = vpop.f32.mrb[0].mxu0
        %v715 = vadd.f32 0.0, %v714
        %v716 = vpop.f32.mrb[0].mxu0
        %717 = vdwg.mxu0
        %v718 = vrcp.pop %v710
        %v719 = vrcp.pop %v715
        %721 = vset.pattern.permute.xlu0 32
        %722 = vperm.xlu0 %721, %v718
        %v723 = vpop.permute.xlu0 %722
        %726 = vset.pattern.permute.xlu0 32
        %727 = vperm.xlu0 %726, %v719
        %v728 = vpop.permute.xlu0 %727
        %v730 = vmul.f32 %v710, %v723
        %v731 = vmul.f32 %v715, %v728
        %v732 = vsel %vm495, %v601, %v730
        %v733 = vsel %vm495, %v602, %v731
        %v734 = vlaneseq
        %v735 = vshrl.u32 %v734, 7
        %v736 = vsub.s32 0, %v735
        %v737 = vrot.slane %v261, %v736
        %v738 = vadd.f32 %v732, %v737
        %v739 = vadd.f32 %v733, %v737
        %vm740 = vcmp.gt.f32.partialorder %v738, 0.0
        %vm741 = vcmp.gt.f32.partialorder %v739, 0.0
        %v742 = vmin.f32 %v738, 0.0
        %v743 = vmin.f32 %v739, 0.0
        %v744 = vmul.f32 %v742, 1.442695
        %v745 = vpow.pop %v744
        %v746 = vmul.f32 %v743, 1.442695
        %v747 = vpow.pop %v746
        %v748 = vsub.f32 %v745, 1.0
        %v749 = vsub.f32 %v747, 1.0
        %v750 = vsel %vm740, %v738, %v748
        %v751 = vsel %vm741, %v739, %v749
        %v753 = vsel %vm274, %v750, 0
        %v756 = vsel %vm274, %v751, 0
        %758 = vmatprep.subr.mxu0 0.0
        %759 = vmatpush1.msra.mxu0 %v262
        %760 = vmatprep.subr.mxu0 0.0
        %761 = vmatpush1.msra.mxu0 %v263
        %762 = vmatprep.subr.mxu0 0.0
        %763 = vmatpush1.msra.mxu0 %v264
        %764 = vmatprep.subr.mxu0 0.0
        %765 = vmatpush1.msra.mxu0 %v265
        %766 = vmatprep.subr.mxu0 0.0
        %767 = vmatpush1.msra.mxu0 0.0
        %768 = vmatprep.subr.mxu0 0.0
        %769 = vmatpush1.msra.mxu0 0.0
        %770 = vmatprep.subr.mxu0 0.0
        %771 = vmatpush1.msra.mxu0 0.0
        %772 = vmatprep.subr.mxu0 0.0
        %773 = vmatpush1.msra.mxu0 0.0
        %774 = vmatprep.subr.mxu0 0.0
        %775 = vmatpush1.msra.mxu0 0.0
        %776 = vmatprep.subr.mxu0 0.0
        %777 = vmatpush1.msra.mxu0 0.0
        %778 = vmatprep.subr.mxu0 0.0
        %779 = vmatpush1.msra.mxu0 0.0
        %780 = vmatprep.subr.mxu0 0.0
        %781 = vmatpush1.msra.mxu0 0.0
        %782 = vmatprep.subr.mxu0 0.0
        %783 = vmatpush1.msra.mxu0 0.0
        %784 = vmatprep.subr.mxu0 0.0
        %785 = vmatpush1.msra.mxu0 0.0
        %786 = vmatprep.subr.mxu0 0.0
        %787 = vmatpush1.msra.mxu0 0.0
        %788 = vmatprep.subr.mxu0 0.0
        %789 = vmatpush1.msra.mxu0 0.0
        %790 = vmatprep.subr.mxu0 0.0
        %791 = vmatpush1.msra.mxu0 0.0
        %792 = vmatprep.subr.mxu0 0.0
        %793 = vmatpush1.msra.mxu0 0.0
        %794 = vmatprep.subr.mxu0 0.0
        %795 = vmatpush1.msra.mxu0 0.0
        %796 = vmatprep.subr.mxu0 0.0
        %797 = vmatpush1.msra.mxu0 0.0
        %798 = vmatprep.subr.mxu0 0.0
        %799 = vmatpush1.msra.mxu0 0.0
        %800 = vmatprep.subr.mxu0 0.0
        %801 = vmatpush1.msra.mxu0 0.0
        %802 = vmatprep.subr.mxu0 0.0
        %803 = vmatpush1.msra.mxu0 0.0
        %804 = vmatprep.subr.mxu0 0.0
        %805 = vmatpush1.msra.mxu0 0.0
        %806 = vmatprep.subr.mxu0 0.0
        %807 = vmatpush1.msra.mxu0 0.0
        %808 = vmatprep.subr.mxu0 0.0
        %809 = vmatpush1.msra.mxu0 0.0
        %810 = vmatprep.subr.mxu0 0.0
        %811 = vmatpush1.msra.mxu0 0.0
        %812 = vmatprep.subr.mxu0 0.0
        %813 = vmatpush1.msra.mxu0 0.0
        %814 = vmatprep.subr.mxu0 0.0
        %815 = vmatpush1.msra.mxu0 0.0
        %816 = vmatprep.subr.mxu0 0.0
        %817 = vmatpush1.msra.mxu0 0.0
        %818 = vmatprep.subr.mxu0 0.0
        %819 = vmatpush1.msra.mxu0 0.0
        %820 = vmatprep.subr.mxu0 0.0
        %821 = vmatpush1.msra.mxu0 0.0
        %822 = vmatprep.mubr.f32.mxu0 0.0
        %823 = vmatmul.mubr.f32.gmra.mrb[0].mxu0 %v753
        %v824 = vpop.f32.mrb[0].mxu0
        %v825 = vadd.f32 0.0, %v824
        %v826 = vpop.f32.mrb[0].mxu0
        %827 = vmatprep.mubr.f32.mxu0 0.0
        %828 = vmatmul.mubr.f32.gmra.mrb[0].mxu0 %v756
        %v829 = vpop.f32.mrb[0].mxu0
        %v830 = vadd.f32 0.0, %v829
        %v831 = vpop.f32.mrb[0].mxu0
        %832 = vdwg.mxu0
        %vm833 = vcmask 15360
        %v835 = vsel %vm833, %v825, 0
        %v838 = vsel %vm833, %v830, 0
        %vm840 = vcmask 1041408
        %v842 = vsel %vm840, %v266, 0
        %844 = vmatprep.subr.mxu0 0.0
        %845 = vmatpush1.msra.mxu0 %v842
        %846 = vmatprep.subr.mxu0 0.0
        %847 = vmatpush1.msra.mxu0 0.0
        %848 = vmatprep.subr.mxu0 0.0
        %849 = vmatpush1.msra.mxu0 0.0
        %850 = vmatprep.subr.mxu0 0.0
        %851 = vmatpush1.msra.mxu0 0.0
        %852 = vmatprep.subr.mxu0 0.0
        %853 = vmatpush1.msra.mxu0 0.0
        %854 = vmatprep.subr.mxu0 0.0
        %855 = vmatpush1.msra.mxu0 0.0
        %856 = vmatprep.subr.mxu0 0.0
        %857 = vmatpush1.msra.mxu0 0.0
        %858 = vmatprep.subr.mxu0 0.0
        %859 = vmatpush1.msra.mxu0 0.0
        %860 = vmatprep.subr.mxu0 0.0
        %861 = vmatpush1.msra.mxu0 0.0
        %862 = vmatprep.subr.mxu0 0.0
        %863 = vmatpush1.msra.mxu0 0.0
        %864 = vmatprep.subr.mxu0 0.0
        %865 = vmatpush1.msra.mxu0 0.0
        %866 = vmatprep.subr.mxu0 0.0
        %867 = vmatpush1.msra.mxu0 0.0
        %868 = vmatprep.subr.mxu0 0.0
        %869 = vmatpush1.msra.mxu0 0.0
        %870 = vmatprep.subr.mxu0 0.0
        %871 = vmatpush1.msra.mxu0 0.0
        %872 = vmatprep.subr.mxu0 0.0
        %873 = vmatpush1.msra.mxu0 0.0
        %874 = vmatprep.subr.mxu0 0.0
        %875 = vmatpush1.msra.mxu0 0.0
        %876 = vmatprep.subr.mxu0 0.0
        %877 = vmatpush1.msra.mxu0 0.0
        %878 = vmatprep.subr.mxu0 0.0
        %879 = vmatpush1.msra.mxu0 0.0
        %880 = vmatprep.subr.mxu0 0.0
        %881 = vmatpush1.msra.mxu0 0.0
        %882 = vmatprep.subr.mxu0 0.0
        %883 = vmatpush1.msra.mxu0 0.0
        %884 = vmatprep.subr.mxu0 0.0
        %885 = vmatpush1.msra.mxu0 0.0
        %886 = vmatprep.subr.mxu0 0.0
        %887 = vmatpush1.msra.mxu0 0.0
        %888 = vmatprep.subr.mxu0 0.0
        %889 = vmatpush1.msra.mxu0 0.0
        %890 = vmatprep.subr.mxu0 0.0
        %891 = vmatpush1.msra.mxu0 0.0
        %892 = vmatprep.subr.mxu0 0.0
        %893 = vmatpush1.msra.mxu0 0.0
        %894 = vmatprep.subr.mxu0 0.0
        %895 = vmatpush1.msra.mxu0 0.0
        %896 = vmatprep.subr.mxu0 0.0
        %897 = vmatpush1.msra.mxu0 0.0
        %898 = vmatprep.subr.mxu0 0.0
        %899 = vmatpush1.msra.mxu0 0.0
        %900 = vmatprep.subr.mxu0 0.0
        %901 = vmatpush1.msra.mxu0 0.0
        %902 = vmatprep.subr.mxu0 0.0
        %903 = vmatpush1.msra.mxu0 0.0
        %904 = vmatprep.subr.mxu0 0.0
        %905 = vmatpush1.msra.mxu0 0.0
        %906 = vmatprep.subr.mxu0 0.0
        %907 = vmatpush1.msra.mxu0 0.0
        %908 = vmatprep.mubr.f32.mxu0 0.0
        %909 = vmatmul.mubr.f32.gmra.mrb[0].mxu0 %v835
        %v910 = vpop.f32.mrb[0].mxu0
        %v911 = vadd.f32 0.0, %v910
        %v912 = vpop.f32.mrb[0].mxu0
        %913 = vmatprep.mubr.f32.mxu0 0.0
        %914 = vmatmul.mubr.f32.gmra.mrb[0].mxu0 %v838
        %v915 = vpop.f32.mrb[0].mxu0
        %v916 = vadd.f32 0.0, %v915
        %v917 = vpop.f32.mrb[0].mxu0
        %918 = vdwg.mxu0
        %919 = vxpose.xlu0.b32.start [1/16] %v911, 128
        %920 = vxpose.xlu0.b32.cont [2/16] %v916, 128
        %921 = vxpose.xlu0.b32.cont [3/16] 0.0, 128
        %922 = vxpose.xlu0.b32.cont [4/16] 0.0, 128
        %923 = vxpose.xlu0.b32.cont [5/16] 0.0, 128
        %924 = vxpose.xlu0.b32.cont [6/16] 0.0, 128
        %925 = vxpose.xlu0.b32.cont [7/16] 0.0, 128
        %926 = vxpose.xlu0.b32.cont [8/16] 0.0, 128
        %927 = vxpose.xlu0.b32.cont [9/16] 0.0, 128
        %928 = vxpose.xlu0.b32.cont [10/16] 0.0, 128
        %929 = vxpose.xlu0.b32.cont [11/16] 0.0, 128
        %930 = vxpose.xlu0.b32.cont [12/16] 0.0, 128
        %931 = vxpose.xlu0.b32.cont [13/16] 0.0, 128
        %932 = vxpose.xlu0.b32.cont [14/16] 0.0, 128
        %933 = vxpose.xlu0.b32.cont [15/16] 0.0, 128
        %934 = vxpose.xlu0.b32.end [16/16] 0.0, 128
        %v935 = vpop.trf.xlu0
        %v936 = vpop.trf.xlu0
        %v937 = vpop.trf.xlu0
        %v938 = vpop.trf.xlu0
        %v939 = vpop.trf.xlu0
        %v940 = vpop.trf.xlu0
        %v941 = vpop.trf.xlu0
        %v942 = vpop.trf.xlu0
        %v943 = vpop.trf.xlu0
        %v944 = vpop.trf.xlu0
        %v945 = vpop.trf.xlu0
        %v946 = vpop.trf.xlu0
        %v947 = vpop.trf.xlu0
        %v948 = vpop.trf.xlu0
        %v949 = vpop.trf.xlu0
        %v950 = vpop.trf.xlu0
        %v951 = vsel %vm833, %v825, 1.0
        %v952 = vsel %vm833, %v830, 1.0
        %954 = vset.pattern.permute.xlu0 1
        %955 = vperm.xlu0 %954, %v911
        %v956 = vpop.permute.xlu0 %955
        %959 = vset.pattern.permute.xlu0 1
        %960 = vperm.xlu0 %959, %v916
        %v961 = vpop.permute.xlu0 %960
        %v963 = vlaneseq
        %v964 = vshrl.u32 %v963, 7
        %v965 = vsub.s32 0, %v964
        %v966 = vrot.slane %v935, %v965
        %v967 = vadd.f32 %v956, %v966
        %v968 = vadd.f32 %v961, %v966
        %vm969 = vcmp.gt.f32.partialorder %v967, 0.0
        %vm970 = vcmp.gt.f32.partialorder %v968, 0.0
        %v971 = vmul.f32 %v967, 0.2
        %v972 = vmul.f32 %v968, 0.2
        %v973 = vsel %vm969, %v967, %v971
        %v974 = vsel %vm970, %v968, %v972
        %v975 = vsel %vm251, %v973, -1e+30
        %v976 = vsel %vm252, %v974, -1e+30
        %v977 = vsel %vm495, %v975, -inf
        %978 = vmax.xlane.f32.xlu0 %v977
        %v979 = vpop.xlane.xlu0 %978
        %v980 = vsel %vm495, %v976, -inf
        %981 = vmax.xlane.f32.xlu0 %v980
        %v982 = vpop.xlane.xlu0 %981
        %v983 = vsub.f32 %v975, %v979
        %v984 = vsub.f32 %v976, %v982
        %v985 = vmul.f32 %v983, 1.442695
        %v986 = vpow.pop %v985
        %v987 = vmul.f32 %v984, 1.442695
        %v988 = vpow.pop %v987
        %v990 = vsel %vm495, %v986, 0
        %v993 = vsel %vm495, %v988, 0
        %995 = vmatprep.subr.mxu0 0.0
        %996 = vmatpush1.msra.mxu0 %v951
        %997 = vmatprep.subr.mxu0 0.0
        %998 = vmatpush1.msra.mxu0 %v952
        %999 = vmatprep.subr.mxu0 0.0
        %1000 = vmatpush1.msra.mxu0 0.0
        %1001 = vmatprep.subr.mxu0 0.0
        %1002 = vmatpush1.msra.mxu0 0.0
        %1003 = vmatprep.subr.mxu0 0.0
        %1004 = vmatpush1.msra.mxu0 0.0
        %1005 = vmatprep.subr.mxu0 0.0
        %1006 = vmatpush1.msra.mxu0 0.0
        %1007 = vmatprep.subr.mxu0 0.0
        %1008 = vmatpush1.msra.mxu0 0.0
        %1009 = vmatprep.subr.mxu0 0.0
        %1010 = vmatpush1.msra.mxu0 0.0
        %1011 = vmatprep.subr.mxu0 0.0
        %1012 = vmatpush1.msra.mxu0 0.0
        %1013 = vmatprep.subr.mxu0 0.0
        %1014 = vmatpush1.msra.mxu0 0.0
        %1015 = vmatprep.subr.mxu0 0.0
        %1016 = vmatpush1.msra.mxu0 0.0
        %1017 = vmatprep.subr.mxu0 0.0
        %1018 = vmatpush1.msra.mxu0 0.0
        %1019 = vmatprep.subr.mxu0 0.0
        %1020 = vmatpush1.msra.mxu0 0.0
        %1021 = vmatprep.subr.mxu0 0.0
        %1022 = vmatpush1.msra.mxu0 0.0
        %1023 = vmatprep.subr.mxu0 0.0
        %1024 = vmatpush1.msra.mxu0 0.0
        %1025 = vmatprep.subr.mxu0 0.0
        %1026 = vmatpush1.msra.mxu0 0.0
        %1027 = vmatprep.subr.mxu0 0.0
        %1028 = vmatpush1.msra.mxu0 0.0
        %1029 = vmatprep.subr.mxu0 0.0
        %1030 = vmatpush1.msra.mxu0 0.0
        %1031 = vmatprep.subr.mxu0 0.0
        %1032 = vmatpush1.msra.mxu0 0.0
        %1033 = vmatprep.subr.mxu0 0.0
        %1034 = vmatpush1.msra.mxu0 0.0
        %1035 = vmatprep.subr.mxu0 0.0
        %1036 = vmatpush1.msra.mxu0 0.0
        %1037 = vmatprep.subr.mxu0 0.0
        %1038 = vmatpush1.msra.mxu0 0.0
        %1039 = vmatprep.subr.mxu0 0.0
        %1040 = vmatpush1.msra.mxu0 0.0
        %1041 = vmatprep.subr.mxu0 0.0
        %1042 = vmatpush1.msra.mxu0 0.0
        %1043 = vmatprep.subr.mxu0 0.0
        %1044 = vmatpush1.msra.mxu0 0.0
        %1045 = vmatprep.subr.mxu0 0.0
        %1046 = vmatpush1.msra.mxu0 0.0
        %1047 = vmatprep.subr.mxu0 0.0
        %1048 = vmatpush1.msra.mxu0 0.0
        %1049 = vmatprep.subr.mxu0 0.0
        %1050 = vmatpush1.msra.mxu0 0.0
        %1051 = vmatprep.subr.mxu0 0.0
        %1052 = vmatpush1.msra.mxu0 0.0
        %1053 = vmatprep.subr.mxu0 0.0
        %1054 = vmatpush1.msra.mxu0 0.0
        %1055 = vmatprep.subr.mxu0 0.0
        %1056 = vmatpush1.msra.mxu0 0.0
        %1057 = vmatprep.subr.mxu0 0.0
        %1058 = vmatpush1.msra.mxu0 0.0
        %1059 = vmatprep.mubr.f32.mxu0 0.0
        %1060 = vmatmul.mubr.f32.gmra.mrb[0].mxu0 %v990
        %v1061 = vpop.f32.mrb[0].mxu0
        %v1062 = vadd.f32 0.0, %v1061
        %v1063 = vpop.f32.mrb[0].mxu0
        %1064 = vmatprep.mubr.f32.mxu0 0.0
        %1065 = vmatmul.mubr.f32.gmra.mrb[0].mxu0 %v993
        %v1066 = vpop.f32.mrb[0].mxu0
        %v1067 = vadd.f32 0.0, %v1066
        %v1068 = vpop.f32.mrb[0].mxu0
        %1069 = vdwg.mxu0
        %v1070 = vrcp.pop %v1062
        %v1071 = vrcp.pop %v1067
        %1073 = vset.pattern.permute.xlu0 2
        %1074 = vperm.xlu0 %1073, %v1070
        %v1075 = vpop.permute.xlu0 %1074
        %1078 = vset.pattern.permute.xlu0 2
        %1079 = vperm.xlu0 %1078, %v1071
        %v1080 = vpop.permute.xlu0 %1079
        %v1082 = vmul.f32 %v1062, %v1075
        %v1083 = vmul.f32 %v1067, %v1080
        %v1084 = vadd.f32 %v1082, 0.0
        %v1085 = vadd.f32 %v1083, 0.0
        %v1086 = vlaneseq
        %v1087 = vshrl.u32 %v1086, 7
        %v1088 = vsub.s32 0, %v1087
        %v1089 = vrot.slane %v267, %v1088
        %v1090 = vadd.f32 %v1084, %v1089
        %v1091 = vadd.f32 %v1085, %v1089
        %v1092 = vlaneseq
        %v1093 = vshrl.u32 %v1092, 7
        %v1094 = vsub.s32 0, %v1093
        %v1095 = vrot.slane %v269, %v1094
        %v1097 = vsel %vm833, %v1090, 0
        %v1100 = vsel %vm833, %v1091, 0
        %v1103 = vsel %vm840, %v268, 0
        %1105 = vmatprep.subr.mxu0 0.0
        %1106 = vmatpush1.msra.mxu0 %v1103
        %1107 = vmatprep.subr.mxu0 0.0
        %1108 = vmatpush1.msra.mxu0 0.0
        %1109 = vmatprep.subr.mxu0 0.0
        %1110 = vmatpush1.msra.mxu0 0.0
        %1111 = vmatprep.subr.mxu0 0.0
        %1112 = vmatpush1.msra.mxu0 0.0
        %1113 = vmatprep.subr.mxu0 0.0
        %1114 = vmatpush1.msra.mxu0 0.0
        %1115 = vmatprep.subr.mxu0 0.0
        %1116 = vmatpush1.msra.mxu0 0.0
        %1117 = vmatprep.subr.mxu0 0.0
        %1118 = vmatpush1.msra.mxu0 0.0
        %1119 = vmatprep.subr.mxu0 0.0
        %1120 = vmatpush1.msra.mxu0 0.0
        %1121 = vmatprep.subr.mxu0 0.0
        %1122 = vmatpush1.msra.mxu0 0.0
        %1123 = vmatprep.subr.mxu0 0.0
        %1124 = vmatpush1.msra.mxu0 0.0
        %1125 = vmatprep.subr.mxu0 0.0
        %1126 = vmatpush1.msra.mxu0 0.0
        %1127 = vmatprep.subr.mxu0 0.0
        %1128 = vmatpush1.msra.mxu0 0.0
        %1129 = vmatprep.subr.mxu0 0.0
        %1130 = vmatpush1.msra.mxu0 0.0
        %1131 = vmatprep.subr.mxu0 0.0
        %1132 = vmatpush1.msra.mxu0 0.0
        %1133 = vmatprep.subr.mxu0 0.0
        %1134 = vmatpush1.msra.mxu0 0.0
        %1135 = vmatprep.subr.mxu0 0.0
        %1136 = vmatpush1.msra.mxu0 0.0
        %1137 = vmatprep.subr.mxu0 0.0
        %1138 = vmatpush1.msra.mxu0 0.0
        %1139 = vmatprep.subr.mxu0 0.0
        %1140 = vmatpush1.msra.mxu0 0.0
        %1141 = vmatprep.subr.mxu0 0.0
        %1142 = vmatpush1.msra.mxu0 0.0
        %1143 = vmatprep.subr.mxu0 0.0
        %1144 = vmatpush1.msra.mxu0 0.0
        %1145 = vmatprep.subr.mxu0 0.0
        %1146 = vmatpush1.msra.mxu0 0.0
        %1147 = vmatprep.subr.mxu0 0.0
        %1148 = vmatpush1.msra.mxu0 0.0
        %1149 = vmatprep.subr.mxu0 0.0
        %1150 = vmatpush1.msra.mxu0 0.0
        %1151 = vmatprep.subr.mxu0 0.0
        %1152 = vmatpush1.msra.mxu0 0.0
        %1153 = vmatprep.subr.mxu0 0.0
        %1154 = vmatpush1.msra.mxu0 0.0
        %1155 = vmatprep.subr.mxu0 0.0
        %1156 = vmatpush1.msra.mxu0 0.0
        %1157 = vmatprep.subr.mxu0 0.0
        %1158 = vmatpush1.msra.mxu0 0.0
        %1159 = vmatprep.subr.mxu0 0.0
        %1160 = vmatpush1.msra.mxu0 0.0
        %1161 = vmatprep.subr.mxu0 0.0
        %1162 = vmatpush1.msra.mxu0 0.0
        %1163 = vmatprep.subr.mxu0 0.0
        %1164 = vmatpush1.msra.mxu0 0.0
        %1165 = vmatprep.subr.mxu0 0.0
        %1166 = vmatpush1.msra.mxu0 0.0
        %1167 = vmatprep.subr.mxu0 0.0
        %1168 = vmatpush1.msra.mxu0 0.0
        %1169 = vmatprep.mubr.f32.mxu0 0.0
        %1170 = vmatmul.mubr.f32.gmra.mrb[0].mxu0 %v1097
        %v1171 = vpop.f32.mrb[0].mxu0
        %v1172 = vadd.f32 %v1095, %v1171
        %v1173 = vpop.f32.mrb[0].mxu0
        %1174 = vmatprep.mubr.f32.mxu0 0.0
        %1175 = vmatmul.mubr.f32.gmra.mrb[0].mxu0 %v1100
        %v1176 = vpop.f32.mrb[0].mxu0
        %v1177 = vadd.f32 %v1095, %v1176
        %v1178 = vpop.f32.mrb[0].mxu0
        %1179 = vdwg.mxu0
        %vm1180 = vcmp.gt.f32.partialorder %v1172, 0.0
        %vm1181 = vcmp.gt.f32.partialorder %v1177, 0.0
        %v1182 = vmin.f32 %v1172, 0.0
        %v1183 = vmin.f32 %v1177, 0.0
        %v1184 = vmul.f32 %v1182, 1.442695
        %v1185 = vpow.pop %v1184
        %v1186 = vmul.f32 %v1183, 1.442695
        %v1187 = vpow.pop %v1186
        %v1188 = vsub.f32 %v1185, 1.0
        %v1189 = vsub.f32 %v1187, 1.0
        %v1190 = vsel %vm1180, %v1172, %v1188
        %v1191 = vsel %vm1181, %v1177, %v1189
        %v1192 = vlaneseq
        %v1193 = vshrl.u32 %v1192, 7
        %v1194 = vsub.s32 0, %v1193
        %v1195 = vrot.slane %v272, %v1194
        %v1197 = vsel %vm495, %v1190, 0
        %v1200 = vsel %vm495, %v1191, 0
        %1202 = vmatprep.subr.mxu0 0.0
        %1203 = vmatpush1.msra.mxu0 %v270
        %1204 = vmatprep.subr.mxu0 0.0
        %1205 = vmatpush1.msra.mxu0 %v271
        %1206 = vmatprep.subr.mxu0 0.0
        %1207 = vmatpush1.msra.mxu0 0.0
        %1208 = vmatprep.subr.mxu0 0.0
        %1209 = vmatpush1.msra.mxu0 0.0
        %1210 = vmatprep.subr.mxu0 0.0
        %1211 = vmatpush1.msra.mxu0 0.0
        %1212 = vmatprep.subr.mxu0 0.0
        %1213 = vmatpush1.msra.mxu0 0.0
        %1214 = vmatprep.subr.mxu0 0.0
        %1215 = vmatpush1.msra.mxu0 0.0
        %1216 = vmatprep.subr.mxu0 0.0
        %1217 = vmatpush1.msra.mxu0 0.0
        %1218 = vmatprep.subr.mxu0 0.0
        %1219 = vmatpush1.msra.mxu0 0.0
        %1220 = vmatprep.subr.mxu0 0.0
        %1221 = vmatpush1.msra.mxu0 0.0
        %1222 = vmatprep.subr.mxu0 0.0
        %1223 = vmatpush1.msra.mxu0 0.0
        %1224 = vmatprep.subr.mxu0 0.0
        %1225 = vmatpush1.msra.mxu0 0.0
        %1226 = vmatprep.subr.mxu0 0.0
        %1227 = vmatpush1.msra.mxu0 0.0
        %1228 = vmatprep.subr.mxu0 0.0
        %1229 = vmatpush1.msra.mxu0 0.0
        %1230 = vmatprep.subr.mxu0 0.0
        %1231 = vmatpush1.msra.mxu0 0.0
        %1232 = vmatprep.subr.mxu0 0.0
        %1233 = vmatpush1.msra.mxu0 0.0
        %1234 = vmatprep.subr.mxu0 0.0
        %1235 = vmatpush1.msra.mxu0 0.0
        %1236 = vmatprep.subr.mxu0 0.0
        %1237 = vmatpush1.msra.mxu0 0.0
        %1238 = vmatprep.subr.mxu0 0.0
        %1239 = vmatpush1.msra.mxu0 0.0
        %1240 = vmatprep.subr.mxu0 0.0
        %1241 = vmatpush1.msra.mxu0 0.0
        %1242 = vmatprep.subr.mxu0 0.0
        %1243 = vmatpush1.msra.mxu0 0.0
        %1244 = vmatprep.subr.mxu0 0.0
        %1245 = vmatpush1.msra.mxu0 0.0
        %1246 = vmatprep.subr.mxu0 0.0
        %1247 = vmatpush1.msra.mxu0 0.0
        %1248 = vmatprep.subr.mxu0 0.0
        %1249 = vmatpush1.msra.mxu0 0.0
        %1250 = vmatprep.subr.mxu0 0.0
        %1251 = vmatpush1.msra.mxu0 0.0
        %1252 = vmatprep.subr.mxu0 0.0
        %1253 = vmatpush1.msra.mxu0 0.0
        %1254 = vmatprep.subr.mxu0 0.0
        %1255 = vmatpush1.msra.mxu0 0.0
        %1256 = vmatprep.subr.mxu0 0.0
        %1257 = vmatpush1.msra.mxu0 0.0
        %1258 = vmatprep.subr.mxu0 0.0
        %1259 = vmatpush1.msra.mxu0 0.0
        %1260 = vmatprep.subr.mxu0 0.0
        %1261 = vmatpush1.msra.mxu0 0.0
        %1262 = vmatprep.subr.mxu0 0.0
        %1263 = vmatpush1.msra.mxu0 0.0
        %1264 = vmatprep.subr.mxu0 0.0
        %1265 = vmatpush1.msra.mxu0 0.0
        %1266 = vmatprep.mubr.f32.mxu0 0.0
        %1267 = vmatmul.mubr.f32.gmra.mrb[0].mxu0 %v1197
        %v1268 = vpop.f32.mrb[0].mxu0
        %v1269 = vadd.f32 %v1195, %v1268
        %v1270 = vpop.f32.mrb[0].mxu0
        %1271 = vmatprep.mubr.f32.mxu0 0.0
        %1272 = vmatmul.mubr.f32.gmra.mrb[0].mxu0 %v1200
        %v1273 = vpop.f32.mrb[0].mxu0
        %v1274 = vadd.f32 %v1195, %v1273
        %v1275 = vpop.f32.mrb[0].mxu0
        %1276 = vdwg.mxu0
        %v1278 = vsel %vm495, %v273, 0
        %1280 = vmatprep.subr.mxu0 0.0
        %1281 = vmatpush1.msra.mxu0 %v1269
        %1282 = vmatprep.subr.mxu0 0.0
        %1283 = vmatpush1.msra.mxu0 %v1274
        %1284 = vmatprep.subr.mxu0 0.0
        %1285 = vmatpush1.msra.mxu0 0.0
        %1286 = vmatprep.subr.mxu0 0.0
        %1287 = vmatpush1.msra.mxu0 0.0
        %1288 = vmatprep.subr.mxu0 0.0
        %1289 = vmatpush1.msra.mxu0 0.0
        %1290 = vmatprep.subr.mxu0 0.0
        %1291 = vmatpush1.msra.mxu0 0.0
        %1292 = vmatprep.subr.mxu0 0.0
        %1293 = vmatpush1.msra.mxu0 0.0
        %1294 = vmatprep.subr.mxu0 0.0
        %1295 = vmatpush1.msra.mxu0 0.0
        %1296 = vmatprep.subr.mxu0 0.0
        %1297 = vmatpush1.msra.mxu0 0.0
        %1298 = vmatprep.subr.mxu0 0.0
        %1299 = vmatpush1.msra.mxu0 0.0
        %1300 = vmatprep.subr.mxu0 0.0
        %1301 = vmatpush1.msra.mxu0 0.0
        %1302 = vmatprep.subr.mxu0 0.0
        %1303 = vmatpush1.msra.mxu0 0.0
        %1304 = vmatprep.subr.mxu0 0.0
        %1305 = vmatpush1.msra.mxu0 0.0
        %1306 = vmatprep.subr.mxu0 0.0
        %1307 = vmatpush1.msra.mxu0 0.0
        %1308 = vmatprep.subr.mxu0 0.0
        %1309 = vmatpush1.msra.mxu0 0.0
        %1310 = vmatprep.subr.mxu0 0.0
        %1311 = vmatpush1.msra.mxu0 0.0
        %1312 = vmatprep.subr.mxu0 0.0
        %1313 = vmatpush1.msra.mxu0 0.0
        %1314 = vmatprep.subr.mxu0 0.0
        %1315 = vmatpush1.msra.mxu0 0.0
        %1316 = vmatprep.subr.mxu0 0.0
        %1317 = vmatpush1.msra.mxu0 0.0
        %1318 = vmatprep.subr.mxu0 0.0
        %1319 = vmatpush1.msra.mxu0 0.0
        %1320 = vmatprep.subr.mxu0 0.0
        %1321 = vmatpush1.msra.mxu0 0.0
        %1322 = vmatprep.subr.mxu0 0.0
        %1323 = vmatpush1.msra.mxu0 0.0
        %1324 = vmatprep.subr.mxu0 0.0
        %1325 = vmatpush1.msra.mxu0 0.0
        %1326 = vmatprep.subr.mxu0 0.0
        %1327 = vmatpush1.msra.mxu0 0.0
        %1328 = vmatprep.subr.mxu0 0.0
        %1329 = vmatpush1.msra.mxu0 0.0
        %1330 = vmatprep.subr.mxu0 0.0
        %1331 = vmatpush1.msra.mxu0 0.0
        %1332 = vmatprep.subr.mxu0 0.0
        %1333 = vmatpush1.msra.mxu0 0.0
        %1334 = vmatprep.subr.mxu0 0.0
        %1335 = vmatpush1.msra.mxu0 0.0
        %1336 = vmatprep.subr.mxu0 0.0
        %1337 = vmatpush1.msra.mxu0 0.0
        %1338 = vmatprep.subr.mxu0 0.0
        %1339 = vmatpush1.msra.mxu0 0.0
        %1340 = vmatprep.subr.mxu0 0.0
        %1341 = vmatpush1.msra.mxu0 0.0
        %1342 = vmatprep.subr.mxu0 0.0
        %1343 = vmatpush1.msra.mxu0 0.0
        %1344 = vmatprep.mubr.f32.mxu0 0.0
        %1345 = vmatmul.mubr.f32.gmra.mrb[0].mxu0 %v1278
        %v1346 = vpop.f32.mrb[0].mxu0
        %v1347 = vadd.f32 0.0, %v1346
        %v1348 = vpop.f32.mrb[0].mxu0
        %1349 = vdwg.mxu0
        %v1350 = vlaneseq
        %v1351 = vshrl.u32 %v1350, 7
        %v1352 = vsub.s32 0, %v1351
        %v1353 = vrot.slane %v1347, %v1352
        %1354 = vst [vmem:[%s242] sm:$0xff] %v1353
        %p1355 = scmp.lt.s32.totalorder %s20, 3
        %s1356 = scalar_select %p1355, %s20, 3
        %s1357 = smul.addr %s1356, 8
        %s1358 = scalar_lea.vmem %s3, %s1357
        // Predicated region
        $region45: #{gnn_forward.1} parent=31 // pred_check
          %p1359 = pneg %p111
        $region46: #{gnn_forward.1} parent=31 // pred_check_branch
          %1361 = sbr.rel (%p1359) target = $region48
        $region47: #{gnn_forward.1} parent=31 // pred_region
          _
        $region48: #{gnn_forward.1} parent=31 // pred_fallthru
          _
      $region32: #{gnn_forward.1} parent=5 // pred_fallthru
        _
      %p1362 = scmp.le.s32.totalorder 2, %s15
      // Predicated region
      $region49: #{gnn_forward.1} parent=5 // pred_check
        %p1363 = pneg %p1362
      $region50: #{gnn_forward.1} parent=5 // pred_check_branch
        %1365 = sbr.rel (%p1363) target = $region52
      $region51: #{gnn_forward.1} parent=5 // pred_region
        %s1366 = ssub.s32 %s15, 2
        // Predicated region
        $region53: #{gnn_forward.1} parent=51 // pred_check
          %p1367 = pneg %p117
        $region54: #{gnn_forward.1} parent=51 // pred_check_branch
          %1369 = sbr.rel (%p1367) target = $region56
        $region55: #{gnn_forward.1} parent=51 // pred_region
          %p1370 = scmp.lt.s32.totalorder %s21, 3
          %s1371 = scalar_select %p1370, %s21, 3
          %s1372 = smul.addr %s1371, 8
          %s1373 = scalar_lea.vmem %s3, %s1372
        $region56: #{gnn_forward.1} parent=51 // pred_fallthru
          _
      $region52: #{gnn_forward.1} parent=5 // pred_fallthru
        _
    $region6: #{gnn_forward.1} parent=1 // loop_footer
      %s19 = sadd.s32 1, %s15
    $region7: #{gnn_forward.1} parent=1 // loop_footer_branch
      %14 = sbr.rel target = $region3
    $region8: #{gnn_forward.1} parent=1 // loop_exit
      _
    %1374 = vsyncpa [#allocation3], 1
    %s1375 = scalar_lea.sflag [#allocation3], 1
    %1376 = vsyncpa %s1375, 1
    %1377 = vsyncpa [#allocation5], 1
    %s1378 = scalar_lea.sflag [#allocation5], 1
    %1379 = vsyncpa %s1378, 1

</llo_original>
